<compile_context>
chip_gen: v7x
topology: tpu7x:2x2x1
jax: 0.10.0
libtpu: 0.0.40
codegen_flags: <defaults>
</compile_context>

<pallas_src>
import functools

import numpy as np
import jax
import jax.numpy as jnp
from jax import lax
from jax.experimental import pallas as pl
from jax.experimental.pallas import tpu as pltpu


# ---------------------------------------------------------------------------
# Kernel
# ---------------------------------------------------------------------------

def _apply_activation(y, activation):
    if activation == "relu":
        return jnp.maximum(y, 0.0)
    if activation == "lrelu":
        return jnp.where(y >= 0.0, y, 0.2 * y)
    if activation == "tanh":
        return jnp.tanh(y)
    if activation == "none":
        return y
    # TODO(synk): 'prelu' (learned slope) / 'selu' not wired here.
    raise ValueError(f"unsupported activation: {activation}")


def _style_encoder_kernel(*refs, n_layers, bb, norm, activation, eps):
    """One grid step == `bb` batch samples stacked along the row (sublane) axis.

    refs: x_ref, [S, M, b(, g, bt)] * n_layers, Pfc, Mfc, bfc, o_ref
      x_ref : (bb*H0, W0*C0)           input slab, compute dtype (bf16)
      S     : (KH, bb*Hout, bb*Hin)    f32 0/1 block-diag row selection (reflect pad
                                       + stride along H, per stacked sample)
      M     : (Win*Cin, KH*Wout*Cout)  compute-dtype block-Toeplitz (kw taps, reflect
                                       pad + stride along W, channel contraction),
                                       all KH taps concatenated along the N axis
      b     : (1, Wout*Cout)           f32 bias row
      Pfc   : (bb, bb*Hlast)           f32 per-sample pooling selector
      Mfc   : (Wlast*Clast, style_dim) compute-dtype, 1/(H*W) + 1x1 conv folded
      bfc   : (1, style_dim)           f32
    """
    per = 5 if norm == "ln" else 3
    x_ref = refs[0]
    layer_refs = refs[1:1 + n_layers * per]
    pfc_ref, mfc_ref, bfc_ref = refs[1 + n_layers * per:1 + n_layers * per + 3]
    o_ref = refs[-1]

    cdt = x_ref.dtype
    a = x_ref[...]                                           # (bb*Hin, Win*Cin)
    for l in range(n_layers):
        s_ref = layer_refs[per * l + 0]
        m_ref = layer_refs[per * l + 1]
        b_ref = layer_refs[per * l + 2]
        kh_taps = s_ref.shape[0]
        nc = m_ref.shape[1] // kh_taps                       # Wout*Cout (128-mult)

        # One fat bf16 MXU dot per layer: all KH taps merged along the N axis,
        # f32 accumulation.  No f32 operand reaches the MXU here.
        z = jnp.dot(a, m_ref[...], preferred_element_type=jnp.float32)

        # Per-tap row selection: tiny 0/1 block-diag dots against 128-aligned lane
        # slices of z (reflect pad + stride along H + batch stacking folded into S).
        y = b_ref[...]
        for k in range(kh_taps):
            y = y + jnp.dot(s_ref[k], z[:, k * nc:(k + 1) * nc],
                            preferred_element_type=jnp.float32)

        if norm == "ln":
            # MUNIT custom LayerNorm: per-sample mean / *unbiased* std over (C,H,W),
            # eps added to std outside the sqrt, per-channel affine.  Single pass:
            # sum and sum-of-squares gathered per stacked sample via a block-diag
            # all-ones matrix built from iota.
            g_row = layer_refs[per * l + 3][...]
            bt_row = layer_refs[per * l + 4][...]
            rows = y.shape[0]                                # bb*Hout
            h_out = rows // bb
            n_el = h_out * nc                                # elements per sample
            rid = lax.broadcasted_iota(jnp.int32, (rows, rows), 0) // h_out
            cid = lax.broadcasted_iota(jnp.int32, (rows, rows), 1) // h_out
            pmat = (rid == cid).astype(jnp.float32)
            tot = jnp.sum(jnp.dot(pmat, y, preferred_element_type=jnp.float32),
                          axis=1, keepdims=True)             # (rows, 1) per-sample
            tot2 = jnp.sum(jnp.dot(pmat, y * y, preferred_element_type=jnp.float32),
                           axis=1, keepdims=True)
            mean = tot * (1.0 / n_el)
            var = jnp.maximum((tot2 - tot * mean) * (1.0 / (n_el - 1)), 0.0)
            inv = pl.reciprocal(jnp.sqrt(var) + eps, approx=True)   # EUP slot
            y = (y - mean) * (inv * g_row) + bt_row
        elif norm != "none":
            # TODO(synk): 'batch' / 'inst' / 'adain' need running stats or externally
            # assigned AdaIN params; not wired in this fused per-sample kernel.
            raise ValueError(f"unsupported norm: {norm}")

        a = _apply_activation(y, activation).astype(cdt)     # back to bf16 for next dot

    # AdaptiveAvgPool2d(1) + final 1x1 conv: 1/(H*W) is baked into Mfc, per-sample
    # row pooling folded into Pfc.
    pooled = jnp.dot(a, mfc_ref[...], preferred_element_type=jnp.float32)
    style = jnp.dot(pfc_ref[...], pooled,
                    preferred_element_type=jnp.float32) + bfc_ref[...]
    o_ref[...] = style.astype(o_ref.dtype)


# ---------------------------------------------------------------------------
# Wrapper (pallas_call)
# ---------------------------------------------------------------------------

def _const_spec(arr):
    """Full-array, constant-index block (VMEM-resident across the grid).

    Single-buffered: constant-index weight blocks never change, so double buffering
    only doubles their VMEM footprint.  Fallback for older JAX without pipeline_mode.
    """
    nd = arr.ndim
    idx = lambda *_: (0,) * nd
    try:
        return pl.BlockSpec(arr.shape, idx, pipeline_mode=pl.Buffered(1))
    except (AttributeError, TypeError):
        return pl.BlockSpec(arr.shape, idx)


@functools.partial(jax.jit, static_argnames=("norm", "activation", "eps"))
def style_encoder_forward(x_nhwc, folded, norm="none", activation="relu", eps=1e-5):
    """Fused StyleEncoder forward.  x_nhwc: (B, H, W, C) -> (B, style_dim)."""
    B, H, W, C = x_nhwc.shape
    layers = folded["layers"]
    pfc, mfc, bfc = folded["fc"]
    style_dim = mfc.shape[1]
    bb = pfc.shape[0]                         # samples stacked per grid step (static)
    assert B % bb == 0, "batch must be divisible by samples_per_step"
    num_steps = B // bb

    # Lane-dense stacked slab (rows = B*H, lanes = W*C); contiguous reshape only,
    # no per-call transpose.  Cast is a no-op if data is already in compute dtype.
    x2d = x_nhwc.reshape(B * H, W * C).astype(mfc.dtype)

    names = ("S", "M", "b", "g", "bt") if norm == "ln" else ("S", "M", "b")
    inputs = [x2d]
    in_specs = [pl.BlockSpec((bb * H, W * C), lambda i: (i, 0))]
    for layer in layers:
        for name in names:
            arr = layer[name]
            inputs.append(arr)
            in_specs.append(_const_spec(arr))
    inputs += [pfc, mfc, bfc]
    in_specs += [_const_spec(pfc), _const_spec(mfc), _const_spec(bfc)]

    kernel = functools.partial(_style_encoder_kernel, n_layers=len(layers),
                               bb=bb, norm=norm, activation=activation, eps=eps)
    out = pl.pallas_call(
        kernel,
        grid=(num_steps,),
        in_specs=in_specs,
        out_specs=pl.BlockSpec((bb, style_dim), lambda i: (i, 0)),
        out_shape=jax.ShapeDtypeStruct((B, style_dim), jnp.float32),
        compiler_params=pltpu.CompilerParams(
            # >1 grid steps are sharded over TCs (v7x); 1 step is fine on v5e/v6e.
            dimension_semantics=("parallel",),
            # Explicit budget: well above actual use here, below v7x's 64 MiB phys.
            vmem_limit_bytes=48 * 1024 * 1024,
        ),
    )(*inputs)
    return out


# ---------------------------------------------------------------------------
# One-time parameter folding (done at weight-load time, NOT per forward call)
# ---------------------------------------------------------------------------

def _layer_configs(n_downsample, input_dim, dim):
    cfgs = [(input_dim, dim, 7, 1, 3)]
    d = dim
    for _ in range(2):
        cfgs.append((d, 2 * d, 4, 2, 1))
        d *= 2
    for _ in range(n_downsample - 2):
        cfgs.append((d, d, 4, 2, 1))
    return cfgs, d


def _reflect(idx, n, pad):
    t = idx - pad
    if t < 0:
        t = -t
    if t >= n:
        t = 2 * (n - 1) - t
    assert 0 <= t < n, "reflect pad larger than spatial size"
    return t


def prepare_folded_params(params, H, W, samples_per_step, norm="none",
                          compute_dtype=jnp.bfloat16):
    """Fold reflect-pad convs into (S, M_wide, b_row) constants; stack batch into S."""
    bb = int(samples_per_step)
    layers = []
    h, w_sp = H, W
    for layer in params["convs"]:
        w = np.asarray(layer["w"], np.float32)          # (c_out, c_in, kh, kw)
        b = np.asarray(layer["b"], np.float32)
        stride, pad = layer["stride"], layer["pad"]
        c_out, c_in, kh, kw = w.shape
        h_out = (h + 2 * pad - kh) // stride + 1
        w_out = (w_sp + 2 * pad - kw) // stride + 1

        # Row selection along H (reflect pad + stride), block-diag over bb samples.
        s = np.zeros((kh, bb * h_out, bb * h), np.float32)
        for k in range(kh):
            for smp in range(bb):
                for oh in range(h_out):
                    s[k, smp * h_out + oh,
                      smp * h + _reflect(oh * stride + k, h, pad)] = 1.0

        # Column selection along W (reflect pad + stride).
        t = np.zeros((kw, w_sp, w_out), np.float32)
        for k in range(kw):
            for ow in range(w_out):
                t[k, _reflect(ow * stride + k, w_sp, pad), ow] = 1.0

        # M_wide[wi*Cin+c, kh*(Wout*Cout) + ow*Cout + d]
        #   = sum_kw T[kw, wi, ow] * w[d, c, kh, kw]   (all kh taps along the N axis).
        m = np.einsum("kwo,dchk->hwcod", t, w)          # (kh, w_in, c_in, w_out, c_out)
        m_wide = np.transpose(m, (1, 2, 0, 3, 4)).reshape(w_sp * c_in,
                                                          kh * w_out * c_out)

        entry = {
            "S": jnp.asarray(s, jnp.float32),
            "M": jnp.asarray(m_wide, compute_dtype),
            "b": jnp.asarray(np.tile(b, w_out)[None, :], jnp.float32),
        }
        if norm == "ln":
            gamma = np.asarray(layer["gamma"], np.float32)
            beta = np.asarray(layer["beta"], np.float32)
            entry["g"] = jnp.asarray(np.tile(gamma, w_out)[None, :], jnp.float32)
            entry["bt"] = jnp.asarray(np.tile(beta, w_out)[None, :], jnp.float32)
        layers.append(entry)
        h, w_sp = h_out, w_out

    # AdaptiveAvgPool2d(1) + 1x1 conv folded: 1/(H*W) baked into Mfc, per-sample row
    # pooling into Pfc.
    fc2d = np.asarray(params["fc_w"], np.float32)[:, :, 0, 0]   # (style_dim, c_last)
    mfc = np.tile(fc2d.T, (w_sp, 1)) / float(h * w_sp)          # (w_sp*c_last, style)
    pfc = np.zeros((bb, bb * h), np.float32)
    for smp in range(bb):
        pfc[smp, smp * h:(smp + 1) * h] = 1.0
    bfc = np.asarray(params["fc_b"], np.float32)[None, :]
    return {
        "layers": layers,
        "fc": (jnp.asarray(pfc, jnp.float32),
               jnp.asarray(mfc, compute_dtype),
               jnp.asarray(bfc, jnp.float32)),
    }


def init_params(key, n_downsample, input_dim, dim, style_dim, norm="none"):
    cfgs, d_last = _layer_configs(n_downsample, input_dim, dim)
    convs = []
    for (c_in, c_out, k, s, p) in cfgs:
        key, kw_, kb_, kg_ = jax.random.split(key, 4)
        bound = 1.0 / float(np.sqrt(c_in * k * k))
        w = jax.random.uniform(kw_, (c_out, c_in, k, k), jnp.float32, -bound, bound)
        b = jax.random.uniform(kb_, (c_out,), jnp.float32, -bound, bound)
        layer = {"w": w, "b": b, "kernel": k, "stride": s, "pad": p}
        if norm == "ln":
            layer["gamma"] = jax.random.uniform(kg_, (c_out,), jnp.float32, 0.0, 1.0)
            layer["beta"] = jnp.zeros((c_out,), jnp.float32)
        convs.append(layer)
    key, kw_, kb_ = jax.random.split(key, 3)
    bound = 1.0 / float(np.sqrt(d_last))
    fc_w = jax.random.uniform(kw_, (style_dim, d_last, 1, 1), jnp.float32, -bound, bound)
    fc_b = jax.random.uniform(kb_, (style_dim,), jnp.float32, -bound, bound)
    # TODO(synk): vae=True variant (fc_mean/fc_var Linear heads) not wired here.
    return {"convs": convs, "fc_w": fc_w, "fc_b": fc_b}


# ---------------------------------------------------------------------------
# Pure-JAX reference (faithful to the PyTorch forward)
# ---------------------------------------------------------------------------

def reference_forward(x_nchw, params, norm="none", activation="relu", eps=1e-5):
    x = jnp.transpose(x_nchw, (0, 2, 3, 1)).astype(jnp.float32)
    for layer in params["convs"]:
        p, s = layer["pad"], layer["stride"]
        xp = jnp.pad(x, ((0, 0), (p, p), (p, p), (0, 0)), mode="reflect")
        y = jax.lax.conv_general_dilated(
            xp, jnp.transpose(layer["w"], (2, 3, 1, 0)), (s, s), "VALID",
            dimension_numbers=("NHWC", "HWIO", "NHWC"),
            precision=jax.lax.Precision.HIGHEST)
        y = y + layer["b"]
        if norm == "ln":
            bsz = y.shape[0]
            flat = y.reshape(bsz, -1)
            mean = jnp.mean(flat, axis=1)
            var = jnp.sum((flat - mean[:, None]) ** 2, axis=1) / (flat.shape[1] - 1)
            std = jnp.sqrt(var)
            y = (y - mean.reshape(bsz, 1, 1, 1)) / (std.reshape(bsz, 1, 1, 1) + eps)
            y = y * layer["gamma"].reshape(1, 1, 1, -1) + layer["beta"].reshape(1, 1, 1, -1)
        y = _apply_activation(y, activation)
        x = y
    pooled = jnp.mean(x, axis=(1, 2))                       # (B, C_last)
    fc2d = params["fc_w"][:, :, 0, 0]                       # (style_dim, C_last)
    return pooled @ fc2d.T + params["fc_b"]


# ---------------------------------------------------------------------------
# Demo / self-check
# ---------------------------------------------------------------------------

if __name__ == "__main__":
    key = jax.random.PRNGKey(0)
    k_p, k_x = jax.random.split(key)

    B, C_in, H, W = 2, 4, 16, 16
    n_downsample, dim, style_dim = 2, 8, 8

    x_nchw = jax.random.normal(k_x, (B, C_in, H, W), dtype=jnp.float32)
    # One-time data relayout (NCHW -> NHWC) + bf16 cast at data-load time,
    # outside the per-call path.
    x_nhwc = jnp.transpose(x_nchw, (0, 2, 3, 1)).astype(jnp.bfloat16)

    # Standard StyleEncoder config: norm='none', activ='relu'.
    params = init_params(k_p, n_downsample, C_in, dim, style_dim, norm="none")
    folded = prepare_folded_params(params, H, W, samples_per_step=B, norm="none",
                                   compute_dtype=jnp.bfloat16)
    out = style_encoder_forward(x_nhwc, folded, norm="none", activation="relu")
    out = jax.block_until_ready(out)
    ref = reference_forward(x_nchw, params, norm="none", activation="relu")
    assert out.shape == (B, style_dim)
    rel = float(jnp.linalg.norm(out - ref) / (jnp.linalg.norm(ref) + 1e-12))
    assert rel < 5e-2, f"relative error too large: {rel}"

    # Also exercise the fused custom-LayerNorm ('ln') variant.
    params_ln = init_params(k_p, n_downsample, C_in, dim, style_dim, norm="ln")
    folded_ln = prepare_folded_params(params_ln, H, W, samples_per_step=B, norm="ln",
                                      compute_dtype=jnp.bfloat16)
    out_ln = style_encoder_forward(x_nhwc, folded_ln, norm="ln", activation="relu")
    out_ln = jax.block_until_ready(out_ln)
    ref_ln = reference_forward(x_nchw, params_ln, norm="ln", activation="relu")
    rel_ln = float(jnp.linalg.norm(out_ln - ref_ln) / (jnp.linalg.norm(ref_ln) + 1e-12))
    assert rel_ln < 5e-2, f"relative error too large (ln): {rel_ln}"

    print("KERNEL_OK")
</pallas_src>

<mosaic_0001>
module attributes {stable_mosaic.version = 11 : i64} {
  func.func @_style_encoder_kernel(%arg0: i32, %arg1: memref<32x64xbf16, #tpu.memory_space<vmem>>, %arg2: memref<7x32x32xf32, #tpu.memory_space<vmem>>, %arg3: memref<64x896xbf16, #tpu.memory_space<vmem>>, %arg4: memref<1x128xf32, #tpu.memory_space<vmem>>, %arg5: memref<4x16x32xf32, #tpu.memory_space<vmem>>, %arg6: memref<128x512xbf16, #tpu.memory_space<vmem>>, %arg7: memref<1x128xf32, #tpu.memory_space<vmem>>, %arg8: memref<4x8x16xf32, #tpu.memory_space<vmem>>, %arg9: memref<128x512xbf16, #tpu.memory_space<vmem>>, %arg10: memref<1x128xf32, #tpu.memory_space<vmem>>, %arg11: memref<2x8xf32, #tpu.memory_space<vmem>>, %arg12: memref<128x8xbf16, #tpu.memory_space<vmem>>, %arg13: memref<1x8xf32, #tpu.memory_space<vmem>>, %arg14: memref<2x8xf32, #tpu.memory_space<vmem>>) attributes {dimension_semantics = [#tpu.dimension_semantics<parallel>], iteration_bounds = array<i64: 1>, scalar_prefetch = 0 : i64, scratch_operands = 0 : i64, tpu.core_type = #tpu.core_type<tc>, window_params = [{transform_indices = @transform_0, window_bounds = array<i64: 32, 64>}, {pipeline_mode = #tpu.pipeline_mode<synchronous>, transform_indices = @transform_1, window_bounds = array<i64: 7, 32, 32>}, {pipeline_mode = #tpu.pipeline_mode<synchronous>, transform_indices = @transform_2, window_bounds = array<i64: 64, 896>}, {pipeline_mode = #tpu.pipeline_mode<synchronous>, transform_indices = @transform_3, window_bounds = array<i64: 1, 128>}, {pipeline_mode = #tpu.pipeline_mode<synchronous>, transform_indices = @transform_4, window_bounds = array<i64: 4, 16, 32>}, {pipeline_mode = #tpu.pipeline_mode<synchronous>, transform_indices = @transform_5, window_bounds = array<i64: 128, 512>}, {pipeline_mode = #tpu.pipeline_mode<synchronous>, transform_indices = @transform_6, window_bounds = array<i64: 1, 128>}, {pipeline_mode = #tpu.pipeline_mode<synchronous>, transform_indices = @transform_7, window_bounds = array<i64: 4, 8, 16>}, {pipeline_mode = #tpu.pipeline_mode<synchronous>, transform_indices = @transform_8, window_bounds = array<i64: 128, 512>}, {pipeline_mode = #tpu.pipeline_mode<synchronous>, transform_indices = @transform_9, window_bounds = array<i64: 1, 128>}, {pipeline_mode = #tpu.pipeline_mode<synchronous>, transform_indices = @transform_10, window_bounds = array<i64: 2, 8>}, {pipeline_mode = #tpu.pipeline_mode<synchronous>, transform_indices = @transform_11, window_bounds = array<i64: 128, 8>}, {pipeline_mode = #tpu.pipeline_mode<synchronous>, transform_indices = @transform_12, window_bounds = array<i64: 1, 8>}, {transform_indices = @transform_13, window_bounds = array<i64: 2, 8>}]} {
    %c0 = arith.constant 0 : index
    %c0_0 = arith.constant 0 : index
    %0 = vector.load %arg1[%c0, %c0_0] : memref<32x64xbf16, #tpu.memory_space<vmem>>, vector<32x64xbf16>
    %c0_1 = arith.constant 0 : index
    %c0_2 = arith.constant 0 : index
    %1 = vector.load %arg3[%c0_1, %c0_2] : memref<64x896xbf16, #tpu.memory_space<vmem>>, vector<64x896xbf16>
    %cst = arith.constant dense<0.000000e+00> : vector<32x896xf32>
    %2 = tpu.matmul %0, %1, %cst {dimension_numbers = #tpu.dot_dimension_numbers<[1], [0], [0], [1], [0, 0, 1, 1], [], []>} : vector<32x64xbf16>, vector<64x896xbf16>, vector<32x896xf32> -> vector<32x896xf32>
    %c0_3 = arith.constant 0 : index
    %c0_4 = arith.constant 0 : index
    %3 = vector.load %arg4[%c0_3, %c0_4] : memref<1x128xf32, #tpu.memory_space<vmem>>, vector<1x128xf32>
    %c0_5 = arith.constant 0 : index
    %c0_6 = arith.constant 0 : index
    %c0_7 = arith.constant 0 : index
    %4 = vector.load %arg2[%c0_5, %c0_6, %c0_7] : memref<7x32x32xf32, #tpu.memory_space<vmem>>, vector<1x32x32xf32>
    %5 = vector.shape_cast %4 : vector<1x32x32xf32> to vector<32x32xf32>
    %6 = vector.extract_strided_slice %2 {offsets = [0, 0], sizes = [32, 128], strides = [1, 1]} : vector<32x896xf32> to vector<32x128xf32>
    %cst_8 = arith.constant dense<0.000000e+00> : vector<32x128xf32>
    %7 = tpu.matmul %5, %6, %cst_8 {dimension_numbers = #tpu.dot_dimension_numbers<[1], [0], [0], [1], [0, 0, 1, 1], [], []>} : vector<32x32xf32>, vector<32x128xf32>, vector<32x128xf32> -> vector<32x128xf32>
    %8 = vector.broadcast %3 : vector<1x128xf32> to vector<32x128xf32>
    %9 = arith.addf %8, %7 : vector<32x128xf32>
    %c1 = arith.constant 1 : index
    %c0_9 = arith.constant 0 : index
    %c0_10 = arith.constant 0 : index
    %10 = vector.load %arg2[%c1, %c0_9, %c0_10] : memref<7x32x32xf32, #tpu.memory_space<vmem>>, vector<1x32x32xf32>
    %11 = vector.shape_cast %10 : vector<1x32x32xf32> to vector<32x32xf32>
    %12 = vector.extract_strided_slice %2 {offsets = [0, 128], sizes = [32, 128], strides = [1, 1]} : vector<32x896xf32> to vector<32x128xf32>
    %cst_11 = arith.constant dense<0.000000e+00> : vector<32x128xf32>
    %13 = tpu.matmul %11, %12, %cst_11 {dimension_numbers = #tpu.dot_dimension_numbers<[1], [0], [0], [1], [0, 0, 1, 1], [], []>} : vector<32x32xf32>, vector<32x128xf32>, vector<32x128xf32> -> vector<32x128xf32>
    %14 = arith.addf %9, %13 : vector<32x128xf32>
    %c2 = arith.constant 2 : index
    %c0_12 = arith.constant 0 : index
    %c0_13 = arith.constant 0 : index
    %15 = vector.load %arg2[%c2, %c0_12, %c0_13] : memref<7x32x32xf32, #tpu.memory_space<vmem>>, vector<1x32x32xf32>
    %16 = vector.shape_cast %15 : vector<1x32x32xf32> to vector<32x32xf32>
    %17 = vector.extract_strided_slice %2 {offsets = [0, 256], sizes = [32, 128], strides = [1, 1]} : vector<32x896xf32> to vector<32x128xf32>
    %cst_14 = arith.constant dense<0.000000e+00> : vector<32x128xf32>
    %18 = tpu.matmul %16, %17, %cst_14 {dimension_numbers = #tpu.dot_dimension_numbers<[1], [0], [0], [1], [0, 0, 1, 1], [], []>} : vector<32x32xf32>, vector<32x128xf32>, vector<32x128xf32> -> vector<32x128xf32>
    %19 = arith.addf %14, %18 : vector<32x128xf32>
    %c3 = arith.constant 3 : index
    %c0_15 = arith.constant 0 : index
    %c0_16 = arith.constant 0 : index
    %20 = vector.load %arg2[%c3, %c0_15, %c0_16] : memref<7x32x32xf32, #tpu.memory_space<vmem>>, vector<1x32x32xf32>
    %21 = vector.shape_cast %20 : vector<1x32x32xf32> to vector<32x32xf32>
    %22 = vector.extract_strided_slice %2 {offsets = [0, 384], sizes = [32, 128], strides = [1, 1]} : vector<32x896xf32> to vector<32x128xf32>
    %cst_17 = arith.constant dense<0.000000e+00> : vector<32x128xf32>
    %23 = tpu.matmul %21, %22, %cst_17 {dimension_numbers = #tpu.dot_dimension_numbers<[1], [0], [0], [1], [0, 0, 1, 1], [], []>} : vector<32x32xf32>, vector<32x128xf32>, vector<32x128xf32> -> vector<32x128xf32>
    %24 = arith.addf %19, %23 : vector<32x128xf32>
    %c4 = arith.constant 4 : index
    %c0_18 = arith.constant 0 : index
    %c0_19 = arith.constant 0 : index
    %25 = vector.load %arg2[%c4, %c0_18, %c0_19] : memref<7x32x32xf32, #tpu.memory_space<vmem>>, vector<1x32x32xf32>
    %26 = vector.shape_cast %25 : vector<1x32x32xf32> to vector<32x32xf32>
    %27 = vector.extract_strided_slice %2 {offsets = [0, 512], sizes = [32, 128], strides = [1, 1]} : vector<32x896xf32> to vector<32x128xf32>
    %cst_20 = arith.constant dense<0.000000e+00> : vector<32x128xf32>
    %28 = tpu.matmul %26, %27, %cst_20 {dimension_numbers = #tpu.dot_dimension_numbers<[1], [0], [0], [1], [0, 0, 1, 1], [], []>} : vector<32x32xf32>, vector<32x128xf32>, vector<32x128xf32> -> vector<32x128xf32>
    %29 = arith.addf %24, %28 : vector<32x128xf32>
    %c5 = arith.constant 5 : index
    %c0_21 = arith.constant 0 : index
    %c0_22 = arith.constant 0 : index
    %30 = vector.load %arg2[%c5, %c0_21, %c0_22] : memref<7x32x32xf32, #tpu.memory_space<vmem>>, vector<1x32x32xf32>
    %31 = vector.shape_cast %30 : vector<1x32x32xf32> to vector<32x32xf32>
    %32 = vector.extract_strided_slice %2 {offsets = [0, 640], sizes = [32, 128], strides = [1, 1]} : vector<32x896xf32> to vector<32x128xf32>
    %cst_23 = arith.constant dense<0.000000e+00> : vector<32x128xf32>
    %33 = tpu.matmul %31, %32, %cst_23 {dimension_numbers = #tpu.dot_dimension_numbers<[1], [0], [0], [1], [0, 0, 1, 1], [], []>} : vector<32x32xf32>, vector<32x128xf32>, vector<32x128xf32> -> vector<32x128xf32>
    %34 = arith.addf %29, %33 : vector<32x128xf32>
    %c6 = arith.constant 6 : index
    %c0_24 = arith.constant 0 : index
    %c0_25 = arith.constant 0 : index
    %35 = vector.load %arg2[%c6, %c0_24, %c0_25] : memref<7x32x32xf32, #tpu.memory_space<vmem>>, vector<1x32x32xf32>
    %36 = vector.shape_cast %35 : vector<1x32x32xf32> to vector<32x32xf32>
    %37 = vector.extract_strided_slice %2 {offsets = [0, 768], sizes = [32, 128], strides = [1, 1]} : vector<32x896xf32> to vector<32x128xf32>
    %cst_26 = arith.constant dense<0.000000e+00> : vector<32x128xf32>
    %38 = tpu.matmul %36, %37, %cst_26 {dimension_numbers = #tpu.dot_dimension_numbers<[1], [0], [0], [1], [0, 0, 1, 1], [], []>} : vector<32x32xf32>, vector<32x128xf32>, vector<32x128xf32> -> vector<32x128xf32>
    %39 = arith.addf %34, %38 : vector<32x128xf32>
    %cst_27 = arith.constant 0.000000e+00 : f32
    %40 = vector.broadcast %cst_27 : f32 to vector<32x128xf32>
    %41 = arith.maximumf %39, %40 : vector<32x128xf32>
    %42 = arith.truncf %41 : vector<32x128xf32> to vector<32x128xbf16>
    %c0_28 = arith.constant 0 : index
    %c0_29 = arith.constant 0 : index
    %43 = vector.load %arg6[%c0_28, %c0_29] : memref<128x512xbf16, #tpu.memory_space<vmem>>, vector<128x512xbf16>
    %cst_30 = arith.constant dense<0.000000e+00> : vector<32x512xf32>
    %44 = tpu.matmul %42, %43, %cst_30 {dimension_numbers = #tpu.dot_dimension_numbers<[1], [0], [0], [1], [0, 0, 1, 1], [], []>} : vector<32x128xbf16>, vector<128x512xbf16>, vector<32x512xf32> -> vector<32x512xf32>
    %c0_31 = arith.constant 0 : index
    %c0_32 = arith.constant 0 : index
    %45 = vector.load %arg7[%c0_31, %c0_32] : memref<1x128xf32, #tpu.memory_space<vmem>>, vector<1x128xf32>
    %c0_33 = arith.constant 0 : index
    %c0_34 = arith.constant 0 : index
    %c0_35 = arith.constant 0 : index
    %46 = vector.load %arg5[%c0_33, %c0_34, %c0_35] : memref<4x16x32xf32, #tpu.memory_space<vmem>>, vector<1x16x32xf32>
    %47 = vector.shape_cast %46 : vector<1x16x32xf32> to vector<16x32xf32>
    %48 = vector.extract_strided_slice %44 {offsets = [0, 0], sizes = [32, 128], strides = [1, 1]} : vector<32x512xf32> to vector<32x128xf32>
    %cst_36 = arith.constant dense<0.000000e+00> : vector<16x128xf32>
    %49 = tpu.matmul %47, %48, %cst_36 {dimension_numbers = #tpu.dot_dimension_numbers<[1], [0], [0], [1], [0, 0, 1, 1], [], []>} : vector<16x32xf32>, vector<32x128xf32>, vector<16x128xf32> -> vector<16x128xf32>
    %50 = vector.broadcast %45 : vector<1x128xf32> to vector<16x128xf32>
    %51 = arith.addf %50, %49 : vector<16x128xf32>
    %c1_37 = arith.constant 1 : index
    %c0_38 = arith.constant 0 : index
    %c0_39 = arith.constant 0 : index
    %52 = vector.load %arg5[%c1_37, %c0_38, %c0_39] : memref<4x16x32xf32, #tpu.memory_space<vmem>>, vector<1x16x32xf32>
    %53 = vector.shape_cast %52 : vector<1x16x32xf32> to vector<16x32xf32>
    %54 = vector.extract_strided_slice %44 {offsets = [0, 128], sizes = [32, 128], strides = [1, 1]} : vector<32x512xf32> to vector<32x128xf32>
    %cst_40 = arith.constant dense<0.000000e+00> : vector<16x128xf32>
    %55 = tpu.matmul %53, %54, %cst_40 {dimension_numbers = #tpu.dot_dimension_numbers<[1], [0], [0], [1], [0, 0, 1, 1], [], []>} : vector<16x32xf32>, vector<32x128xf32>, vector<16x128xf32> -> vector<16x128xf32>
    %56 = arith.addf %51, %55 : vector<16x128xf32>
    %c2_41 = arith.constant 2 : index
    %c0_42 = arith.constant 0 : index
    %c0_43 = arith.constant 0 : index
    %57 = vector.load %arg5[%c2_41, %c0_42, %c0_43] : memref<4x16x32xf32, #tpu.memory_space<vmem>>, vector<1x16x32xf32>
    %58 = vector.shape_cast %57 : vector<1x16x32xf32> to vector<16x32xf32>
    %59 = vector.extract_strided_slice %44 {offsets = [0, 256], sizes = [32, 128], strides = [1, 1]} : vector<32x512xf32> to vector<32x128xf32>
    %cst_44 = arith.constant dense<0.000000e+00> : vector<16x128xf32>
    %60 = tpu.matmul %58, %59, %cst_44 {dimension_numbers = #tpu.dot_dimension_numbers<[1], [0], [0], [1], [0, 0, 1, 1], [], []>} : vector<16x32xf32>, vector<32x128xf32>, vector<16x128xf32> -> vector<16x128xf32>
    %61 = arith.addf %56, %60 : vector<16x128xf32>
    %c3_45 = arith.constant 3 : index
    %c0_46 = arith.constant 0 : index
    %c0_47 = arith.constant 0 : index
    %62 = vector.load %arg5[%c3_45, %c0_46, %c0_47] : memref<4x16x32xf32, #tpu.memory_space<vmem>>, vector<1x16x32xf32>
    %63 = vector.shape_cast %62 : vector<1x16x32xf32> to vector<16x32xf32>
    %64 = vector.extract_strided_slice %44 {offsets = [0, 384], sizes = [32, 128], strides = [1, 1]} : vector<32x512xf32> to vector<32x128xf32>
    %cst_48 = arith.constant dense<0.000000e+00> : vector<16x128xf32>
    %65 = tpu.matmul %63, %64, %cst_48 {dimension_numbers = #tpu.dot_dimension_numbers<[1], [0], [0], [1], [0, 0, 1, 1], [], []>} : vector<16x32xf32>, vector<32x128xf32>, vector<16x128xf32> -> vector<16x128xf32>
    %66 = arith.addf %61, %65 : vector<16x128xf32>
    %cst_49 = arith.constant 0.000000e+00 : f32
    %67 = vector.broadcast %cst_49 : f32 to vector<16x128xf32>
    %68 = arith.maximumf %66, %67 : vector<16x128xf32>
    %69 = arith.truncf %68 : vector<16x128xf32> to vector<16x128xbf16>
    %c0_50 = arith.constant 0 : index
    %c0_51 = arith.constant 0 : index
    %70 = vector.load %arg9[%c0_50, %c0_51] : memref<128x512xbf16, #tpu.memory_space<vmem>>, vector<128x512xbf16>
    %cst_52 = arith.constant dense<0.000000e+00> : vector<16x512xf32>
    %71 = tpu.matmul %69, %70, %cst_52 {dimension_numbers = #tpu.dot_dimension_numbers<[1], [0], [0], [1], [0, 0, 1, 1], [], []>} : vector<16x128xbf16>, vector<128x512xbf16>, vector<16x512xf32> -> vector<16x512xf32>
    %c0_53 = arith.constant 0 : index
    %c0_54 = arith.constant 0 : index
    %72 = vector.load %arg10[%c0_53, %c0_54] : memref<1x128xf32, #tpu.memory_space<vmem>>, vector<1x128xf32>
    %c0_55 = arith.constant 0 : index
    %c0_56 = arith.constant 0 : index
    %c0_57 = arith.constant 0 : index
    %73 = vector.load %arg8[%c0_55, %c0_56, %c0_57] : memref<4x8x16xf32, #tpu.memory_space<vmem>>, vector<1x8x16xf32>
    %74 = vector.shape_cast %73 : vector<1x8x16xf32> to vector<8x16xf32>
    %75 = vector.extract_strided_slice %71 {offsets = [0, 0], sizes = [16, 128], strides = [1, 1]} : vector<16x512xf32> to vector<16x128xf32>
    %cst_58 = arith.constant dense<0.000000e+00> : vector<8x128xf32>
    %76 = tpu.matmul %74, %75, %cst_58 {dimension_numbers = #tpu.dot_dimension_numbers<[1], [0], [0], [1], [0, 0, 1, 1], [], []>} : vector<8x16xf32>, vector<16x128xf32>, vector<8x128xf32> -> vector<8x128xf32>
    %77 = vector.broadcast %72 : vector<1x128xf32> to vector<8x128xf32>
    %78 = arith.addf %77, %76 : vector<8x128xf32>
    %c1_59 = arith.constant 1 : index
    %c0_60 = arith.constant 0 : index
    %c0_61 = arith.constant 0 : index
    %79 = vector.load %arg8[%c1_59, %c0_60, %c0_61] : memref<4x8x16xf32, #tpu.memory_space<vmem>>, vector<1x8x16xf32>
    %80 = vector.shape_cast %79 : vector<1x8x16xf32> to vector<8x16xf32>
    %81 = vector.extract_strided_slice %71 {offsets = [0, 128], sizes = [16, 128], strides = [1, 1]} : vector<16x512xf32> to vector<16x128xf32>
    %cst_62 = arith.constant dense<0.000000e+00> : vector<8x128xf32>
    %82 = tpu.matmul %80, %81, %cst_62 {dimension_numbers = #tpu.dot_dimension_numbers<[1], [0], [0], [1], [0, 0, 1, 1], [], []>} : vector<8x16xf32>, vector<16x128xf32>, vector<8x128xf32> -> vector<8x128xf32>
    %83 = arith.addf %78, %82 : vector<8x128xf32>
    %c2_63 = arith.constant 2 : index
    %c0_64 = arith.constant 0 : index
    %c0_65 = arith.constant 0 : index
    %84 = vector.load %arg8[%c2_63, %c0_64, %c0_65] : memref<4x8x16xf32, #tpu.memory_space<vmem>>, vector<1x8x16xf32>
    %85 = vector.shape_cast %84 : vector<1x8x16xf32> to vector<8x16xf32>
    %86 = vector.extract_strided_slice %71 {offsets = [0, 256], sizes = [16, 128], strides = [1, 1]} : vector<16x512xf32> to vector<16x128xf32>
    %cst_66 = arith.constant dense<0.000000e+00> : vector<8x128xf32>
    %87 = tpu.matmul %85, %86, %cst_66 {dimension_numbers = #tpu.dot_dimension_numbers<[1], [0], [0], [1], [0, 0, 1, 1], [], []>} : vector<8x16xf32>, vector<16x128xf32>, vector<8x128xf32> -> vector<8x128xf32>
    %88 = arith.addf %83, %87 : vector<8x128xf32>
    %c3_67 = arith.constant 3 : index
    %c0_68 = arith.constant 0 : index
    %c0_69 = arith.constant 0 : index
    %89 = vector.load %arg8[%c3_67, %c0_68, %c0_69] : memref<4x8x16xf32, #tpu.memory_space<vmem>>, vector<1x8x16xf32>
    %90 = vector.shape_cast %89 : vector<1x8x16xf32> to vector<8x16xf32>
    %91 = vector.extract_strided_slice %71 {offsets = [0, 384], sizes = [16, 128], strides = [1, 1]} : vector<16x512xf32> to vector<16x128xf32>
    %cst_70 = arith.constant dense<0.000000e+00> : vector<8x128xf32>
    %92 = tpu.matmul %90, %91, %cst_70 {dimension_numbers = #tpu.dot_dimension_numbers<[1], [0], [0], [1], [0, 0, 1, 1], [], []>} : vector<8x16xf32>, vector<16x128xf32>, vector<8x128xf32> -> vector<8x128xf32>
    %93 = arith.addf %88, %92 : vector<8x128xf32>
    %cst_71 = arith.constant 0.000000e+00 : f32
    %94 = vector.broadcast %cst_71 : f32 to vector<8x128xf32>
    %95 = arith.maximumf %93, %94 : vector<8x128xf32>
    %96 = arith.truncf %95 : vector<8x128xf32> to vector<8x128xbf16>
    %c0_72 = arith.constant 0 : index
    %c0_73 = arith.constant 0 : index
    %97 = vector.load %arg12[%c0_72, %c0_73] : memref<128x8xbf16, #tpu.memory_space<vmem>>, vector<128x8xbf16>
    %cst_74 = arith.constant dense<0.000000e+00> : vector<8x8xf32>
    %98 = tpu.matmul %96, %97, %cst_74 {dimension_numbers = #tpu.dot_dimension_numbers<[1], [0], [0], [1], [0, 0, 1, 1], [], []>} : vector<8x128xbf16>, vector<128x8xbf16>, vector<8x8xf32> -> vector<8x8xf32>
    %c0_75 = arith.constant 0 : index
    %c0_76 = arith.constant 0 : index
    %99 = vector.load %arg11[%c0_75, %c0_76] : memref<2x8xf32, #tpu.memory_space<vmem>>, vector<2x8xf32>
    %cst_77 = arith.constant dense<0.000000e+00> : vector<2x8xf32>
    %100 = tpu.matmul %99, %98, %cst_77 {dimension_numbers = #tpu.dot_dimension_numbers<[1], [0], [0], [1], [0, 0, 1, 1], [], []>} : vector<2x8xf32>, vector<8x8xf32>, vector<2x8xf32> -> vector<2x8xf32>
    %c0_78 = arith.constant 0 : index
    %c0_79 = arith.constant 0 : index
    %101 = vector.load %arg13[%c0_78, %c0_79] : memref<1x8xf32, #tpu.memory_space<vmem>>, vector<1x8xf32>
    %102 = vector.broadcast %101 : vector<1x8xf32> to vector<2x8xf32>
    %103 = arith.addf %100, %102 : vector<2x8xf32>
    %c0_80 = arith.constant 0 : index
    %c0_81 = arith.constant 0 : index
    %104 = vector.load %arg14[%c0_80, %c0_81] : memref<2x8xf32, #tpu.memory_space<vmem>>, vector<2x8xf32>
    tpu.vector_store %arg14[%c0_80, %c0_81], %103 {strides = array<i32>} : memref<2x8xf32, #tpu.memory_space<vmem>>, vector<2x8xf32>,
    return
  }
  func.func @transform_0(%arg0: i32) -> (i32, i32) {
    %c0_i32 = arith.constant 0 : i32
    %c0_i32_0 = arith.constant 0 : i32
    return %arg0, %c0_i32 : i32, i32
  }
  func.func @transform_1(%arg0: i32) -> (i32, i32, i32) {
    %c0_i32 = arith.constant 0 : i32
    %c0_i32_0 = arith.constant 0 : i32
    %c0_i32_1 = arith.constant 0 : i32
    %c0_i32_2 = arith.constant 0 : i32
    return %c0_i32, %c0_i32_0, %c0_i32_1 : i32, i32, i32
  }
  func.func @transform_2(%arg0: i32) -> (i32, i32) {
    %c0_i32 = arith.constant 0 : i32
    %c0_i32_0 = arith.constant 0 : i32
    %c0_i32_1 = arith.constant 0 : i32
    return %c0_i32, %c0_i32_0 : i32, i32
  }
  func.func @transform_3(%arg0: i32) -> (i32, i32) {
    %c0_i32 = arith.constant 0 : i32
    %c0_i32_0 = arith.constant 0 : i32
    %c0_i32_1 = arith.constant 0 : i32
    return %c0_i32, %c0_i32_0 : i32, i32
  }
  func.func @transform_4(%arg0: i32) -> (i32, i32, i32) {
    %c0_i32 = arith.constant 0 : i32
    %c0_i32_0 = arith.constant 0 : i32
    %c0_i32_1 = arith.constant 0 : i32
    %c0_i32_2 = arith.constant 0 : i32
    return %c0_i32, %c0_i32_0, %c0_i32_1 : i32, i32, i32
  }
  func.func @transform_5(%arg0: i32) -> (i32, i32) {
    %c0_i32 = arith.constant 0 : i32
    %c0_i32_0 = arith.constant 0 : i32
    %c0_i32_1 = arith.constant 0 : i32
    return %c0_i32, %c0_i32_0 : i32, i32
  }
  func.func @transform_6(%arg0: i32) -> (i32, i32) {
    %c0_i32 = arith.constant 0 : i32
    %c0_i32_0 = arith.constant 0 : i32
    %c0_i32_1 = arith.constant 0 : i32
    return %c0_i32, %c0_i32_0 : i32, i32
  }
  func.func @transform_7(%arg0: i32) -> (i32, i32, i32) {
    %c0_i32 = arith.constant 0 : i32
    %c0_i32_0 = arith.constant 0 : i32
    %c0_i32_1 = arith.constant 0 : i32
    %c0_i32_2 = arith.constant 0 : i32
    return %c0_i32, %c0_i32_0, %c0_i32_1 : i32, i32, i32
  }
  func.func @transform_8(%arg0: i32) -> (i32, i32) {
    %c0_i32 = arith.constant 0 : i32
    %c0_i32_0 = arith.constant 0 : i32
    %c0_i32_1 = arith.constant 0 : i32
    return %c0_i32, %c0_i32_0 : i32, i32
  }
  func.func @transform_9(%arg0: i32) -> (i32, i32) {
    %c0_i32 = arith.constant 0 : i32
    %c0_i32_0 = arith.constant 0 : i32
    %c0_i32_1 = arith.constant 0 : i32
    return %c0_i32, %c0_i32_0 : i32, i32
  }
  func.func @transform_10(%arg0: i32) -> (i32, i32) {
    %c0_i32 = arith.constant 0 : i32
    %c0_i32_0 = arith.constant 0 : i32
    %c0_i32_1 = arith.constant 0 : i32
    return %c0_i32, %c0_i32_0 : i32, i32
  }
  func.func @transform_11(%arg0: i32) -> (i32, i32) {
    %c0_i32 = arith.constant 0 : i32
    %c0_i32_0 = arith.constant 0 : i32
    %c0_i32_1 = arith.constant 0 : i32
    return %c0_i32, %c0_i32_0 : i32, i32
  }
  func.func @transform_12(%arg0: i32) -> (i32, i32) {
    %c0_i32 = arith.constant 0 : i32
    %c0_i32_0 = arith.constant 0 : i32
    %c0_i32_1 = arith.constant 0 : i32
    return %c0_i32, %c0_i32_0 : i32, i32
  }
  func.func @transform_13(%arg0: i32) -> (i32, i32) {
    %c0_i32 = arith.constant 0 : i32
    %c0_i32_0 = arith.constant 0 : i32
    return %arg0, %c0_i32 : i32, i32
  }
}

</mosaic_0001>

<llo_original>
// kernel: style_encoder_forward.1
$region0: #{style_encoder_forward.1}
  #allocation0 [shape = 'u32[]', space=smem, size = 0x4, offset = 0x4, fixed_abs, tag = 'smem constant byte address 0x4 - core index']
  #allocation1 [shape = 'u32[144,128]{1,0:T(1,128)}', space=vmem, size = 0x12000, scoped, tag = 'internal scratch']
  %s0 = inlined_call_operand.vmem [shape: bf16[32,64], index: 0, kind: input, shape index: {}]
  %s1 = inlined_call_operand.hbm [shape: f32[7,32,32], index: 1, kind: input, shape index: {}]
  %s2 = inlined_call_operand.hbm [shape: bf16[64,896], index: 2, kind: input, shape index: {}]
  %s3 = inlined_call_operand.vmem [shape: f32[1,128], index: 3, kind: input, shape index: {}]
  %s4 = inlined_call_operand.vmem [shape: f32[4,16,32], index: 4, kind: input, shape index: {}]
  %s5 = inlined_call_operand.vmem [shape: bf16[128,512], index: 5, kind: input, shape index: {}]
  %s6 = inlined_call_operand.vmem [shape: f32[1,128], index: 6, kind: input, shape index: {}]
  %s7 = inlined_call_operand.vmem [shape: f32[4,8,16], index: 7, kind: input, shape index: {}]
  %s8 = inlined_call_operand.hbm [shape: bf16[128,512], index: 8, kind: input, shape index: {}]
  %s9 = inlined_call_operand.vmem [shape: f32[1,128], index: 9, kind: input, shape index: {}]
  %s10 = inlined_call_operand.vmem [shape: f32[2,8], index: 10, kind: input, shape index: {}]
  %s11 = inlined_call_operand.vmem [shape: bf16[128,8], index: 11, kind: input, shape index: {}]
  %s12 = inlined_call_operand.vmem [shape: f32[1,8], index: 12, kind: input, shape index: {}]
  %s13 = inlined_call_operand.hbm [shape: f32[2,8], index: 13, kind: output, shape index: {}]
  %s14 = sld [smem:[#allocation0]]
  $region74: #{style_encoder_forward.1} parent=0
    _
  %s16 = ssub.s32 1, %s14
  %s17 = scalar_select 0, %s16, %s14
  $region1: #{style_encoder_forward.1} parent=0
    #allocation2 [shape = 'u8[114688]{0}', space=vmem, size = 0x1c000, scoped, tag = 'input window, operand 1, single buffered']
    #allocation3 [shape = 's32[1]{0}', space=sflag, size = 0x4, scoped, tag = 'scoped memory for style_encoder_forward.1']
    #allocation4 [shape = 's32[1]{0}', space=sflag, size = 0x4, scoped, tag = 'scoped memory for style_encoder_forward.1']
    #allocation5 [shape = 'u8[114688]{0}', space=vmem, size = 0x1c000, scoped, tag = 'input window, operand 2, single buffered']
    #allocation6 [shape = 's32[1]{0}', space=sflag, size = 0x4, scoped, tag = 'scoped memory for style_encoder_forward.1']
    #allocation7 [shape = 'u8[131072]{0}', space=vmem, size = 0x20000, scoped, tag = 'input window, operand 8, single buffered']
    #allocation8 [shape = 'u8[1024]{0}', space=vmem, size = 0x400, scoped, tag = 'output window, operand 0, single buffered']
    %18 = vsyncpa [#allocation3], 0
    %19 = vsyncpa [#allocation6], 0
    %20 = vsyncpa [#allocation4], 0
    // Predicated region
    $region2: #{style_encoder_forward.1} parent=1 // pred_check
      _
    $region3: #{style_encoder_forward.1} parent=1 // pred_check_branch
      %22 = sbr.rel (0) target = $region5
    $region4: #{style_encoder_forward.1} parent=1 // pred_region
      _
    $region5: #{style_encoder_forward.1} parent=1 // pred_fallthru
      _
    // Predicated region
    $region6: #{style_encoder_forward.1} parent=1 // pred_check
      _
    $region7: #{style_encoder_forward.1} parent=1 // pred_check_branch
      %24 = sbr.rel (0) target = $region9
    $region8: #{style_encoder_forward.1} parent=1 // pred_region
      %s26 = ssub.s32 3584, 3584
      %27 = vsyncadd [#allocation3], %s26
      %s28 = sshll.u32 [#allocation2], 4
      %s29 = int_to_ptr.vmem [resolvable:$true] %s28
      %34 = dma.hbm_to_vmem [thread:$0]  %s1, 3584, %s29, [#allocation3], 128, 128, 8
    $region9: #{style_encoder_forward.1} parent=1 // pred_fallthru
      _
    // Predicated region
    $region10: #{style_encoder_forward.1} parent=1 // pred_check
      _
    $region11: #{style_encoder_forward.1} parent=1 // pred_check_branch
      %36 = sbr.rel (0) target = $region13
    $region12: #{style_encoder_forward.1} parent=1 // pred_region
      %s38 = ssub.s32 3584, 3584
      %39 = vsyncadd [#allocation6], %s38
      %s40 = sshll.u32 [#allocation5], 4
      %s41 = int_to_ptr.vmem [resolvable:$true] %s40
      %46 = dma.hbm_to_vmem [thread:$0]  %s2, 3584, %s41, [#allocation6], 448, 448, 28
    $region13: #{style_encoder_forward.1} parent=1 // pred_fallthru
      _
    // Predicated region
    $region14: #{style_encoder_forward.1} parent=1 // pred_check
      _
    $region15: #{style_encoder_forward.1} parent=1 // pred_check_branch
      %48 = sbr.rel (0) target = $region17
    $region16: #{style_encoder_forward.1} parent=1 // pred_region
      _
    $region17: #{style_encoder_forward.1} parent=1 // pred_fallthru
      _
    // Predicated region
    $region18: #{style_encoder_forward.1} parent=1 // pred_check
      _
    $region19: #{style_encoder_forward.1} parent=1 // pred_check_branch
      %50 = sbr.rel (0) target = $region21
    $region20: #{style_encoder_forward.1} parent=1 // pred_region
      _
    $region21: #{style_encoder_forward.1} parent=1 // pred_fallthru
      _
    // Predicated region
    $region22: #{style_encoder_forward.1} parent=1 // pred_check
      _
    $region23: #{style_encoder_forward.1} parent=1 // pred_check_branch
      %52 = sbr.rel (0) target = $region25
    $region24: #{style_encoder_forward.1} parent=1 // pred_region
      _
    $region25: #{style_encoder_forward.1} parent=1 // pred_fallthru
      _
    // Predicated region
    $region26: #{style_encoder_forward.1} parent=1 // pred_check
      _
    $region27: #{style_encoder_forward.1} parent=1 // pred_check_branch
      %54 = sbr.rel (0) target = $region29
    $region28: #{style_encoder_forward.1} parent=1 // pred_region
      _
    $region29: #{style_encoder_forward.1} parent=1 // pred_fallthru
      _
    // Predicated region
    $region30: #{style_encoder_forward.1} parent=1 // pred_check
      _
    $region31: #{style_encoder_forward.1} parent=1 // pred_check_branch
      %56 = sbr.rel (0) target = $region33
    $region32: #{style_encoder_forward.1} parent=1 // pred_region
      _
    $region33: #{style_encoder_forward.1} parent=1 // pred_fallthru
      _
    // Predicated region
    $region34: #{style_encoder_forward.1} parent=1 // pred_check
      _
    $region35: #{style_encoder_forward.1} parent=1 // pred_check_branch
      %58 = sbr.rel (0) target = $region37
    $region36: #{style_encoder_forward.1} parent=1 // pred_region
      %s60 = ssub.s32 4096, 4096
      %61 = vsyncadd [#allocation6], %s60
      %s62 = sshll.u32 [#allocation7], 4
      %s63 = int_to_ptr.vmem [resolvable:$true] %s62
      %68 = dma.hbm_to_vmem [thread:$0]  %s8, 4096, %s63, [#allocation6], 256, 256, 16
    $region37: #{style_encoder_forward.1} parent=1 // pred_fallthru
      _
    // Predicated region
    $region38: #{style_encoder_forward.1} parent=1 // pred_check
      _
    $region39: #{style_encoder_forward.1} parent=1 // pred_check_branch
      %70 = sbr.rel (0) target = $region41
    $region40: #{style_encoder_forward.1} parent=1 // pred_region
      _
    $region41: #{style_encoder_forward.1} parent=1 // pred_fallthru
      _
    // Predicated region
    $region42: #{style_encoder_forward.1} parent=1 // pred_check
      _
    $region43: #{style_encoder_forward.1} parent=1 // pred_check_branch
      %72 = sbr.rel (0) target = $region45
    $region44: #{style_encoder_forward.1} parent=1 // pred_region
      _
    $region45: #{style_encoder_forward.1} parent=1 // pred_fallthru
      _
    // Predicated region
    $region46: #{style_encoder_forward.1} parent=1 // pred_check
      _
    $region47: #{style_encoder_forward.1} parent=1 // pred_check_branch
      %74 = sbr.rel (0) target = $region49
    $region48: #{style_encoder_forward.1} parent=1 // pred_region
      _
    $region49: #{style_encoder_forward.1} parent=1 // pred_fallthru
      _
    // Predicated region
    $region50: #{style_encoder_forward.1} parent=1 // pred_check
      _
    $region51: #{style_encoder_forward.1} parent=1 // pred_check_branch
      %76 = sbr.rel (0) target = $region53
    $region52: #{style_encoder_forward.1} parent=1 // pred_region
      _
    $region53: #{style_encoder_forward.1} parent=1 // pred_fallthru
      _
    // Predicated region
    $region54: #{style_encoder_forward.1} parent=1 // pred_check
      _
    $region55: #{style_encoder_forward.1} parent=1 // pred_check_branch
      %78 = sbr.rel (0) target = $region57
    $region56: #{style_encoder_forward.1} parent=1 // pred_region
      %79 = dma.done [#allocation3], 3584
    $region57: #{style_encoder_forward.1} parent=1 // pred_fallthru
      _
    // Predicated region
    $region58: #{style_encoder_forward.1} parent=1 // pred_check
      _
    $region59: #{style_encoder_forward.1} parent=1 // pred_check_branch
      %81 = sbr.rel (0) target = $region61
    $region60: #{style_encoder_forward.1} parent=1 // pred_region
      %82 = dma.done [#allocation6], 3584
    $region61: #{style_encoder_forward.1} parent=1 // pred_fallthru
      _
    // Predicated region
    $region62: #{style_encoder_forward.1} parent=1 // pred_check
      _
    $region63: #{style_encoder_forward.1} parent=1 // pred_check_branch
      %84 = sbr.rel (0) target = $region65
    $region64: #{style_encoder_forward.1} parent=1 // pred_region
      %85 = dma.done [#allocation6], 4096
    $region65: #{style_encoder_forward.1} parent=1 // pred_fallthru
      _
    %v87 = vld [vmem:[%s0] sm:$0xf]
    %v88 = vld [vmem:[%s0 + $0x4] sm:$0xf]
    %v89 = vld [vmem:[%s0 + $0x8] sm:$0xf]
    %v90 = vld [vmem:[%s0 + $0xc] sm:$0xf]
    %v91 = vld [vmem:[#allocation5] sm:$0xff]
    %v92 = vld [vmem:[#allocation5 + $0x8] sm:$0xff]
    %v93 = vld [vmem:[#allocation5 + $0x10] sm:$0xff]
    %v94 = vld [vmem:[#allocation5 + $0x18] sm:$0xf]
    %v95 = vld [vmem:[#allocation5 + $0x1c] sm:$0xff]
    %v96 = vld [vmem:[#allocation5 + $0x24] sm:$0xff]
    %v97 = vld [vmem:[#allocation5 + $0x2c] sm:$0xff]
    %v98 = vld [vmem:[#allocation5 + $0x34] sm:$0xf]
    %v99 = vld [vmem:[#allocation5 + $0x38] sm:$0xff]
    %v100 = vld [vmem:[#allocation5 + $0x40] sm:$0xff]
    %v101 = vld [vmem:[#allocation5 + $0x48] sm:$0xff]
    %v102 = vld [vmem:[#allocation5 + $0x50] sm:$0xf]
    %v103 = vld [vmem:[#allocation5 + $0x54] sm:$0xff]
    %v104 = vld [vmem:[#allocation5 + $0x5c] sm:$0xff]
    %v105 = vld [vmem:[#allocation5 + $0x64] sm:$0xff]
    %v106 = vld [vmem:[#allocation5 + $0x6c] sm:$0xf]
    %v107 = vld [vmem:[#allocation5 + $0x70] sm:$0xff]
    %v108 = vld [vmem:[#allocation5 + $0x78] sm:$0xff]
    %v109 = vld [vmem:[#allocation5 + $0x80] sm:$0xff]
    %v110 = vld [vmem:[#allocation5 + $0x88] sm:$0xf]
    %v111 = vld [vmem:[#allocation5 + $0x8c] sm:$0xff]
    %v112 = vld [vmem:[#allocation5 + $0x94] sm:$0xff]
    %v113 = vld [vmem:[#allocation5 + $0x9c] sm:$0xff]
    %v114 = vld [vmem:[#allocation5 + $0xa4] sm:$0xf]
    %v115 = vld [vmem:[#allocation5 + $0xa8] sm:$0xff]
    %v116 = vld [vmem:[#allocation5 + $0xb0] sm:$0xff]
    %v117 = vld [vmem:[#allocation5 + $0xb8] sm:$0xff]
    %v118 = vld [vmem:[#allocation5 + $0xc0] sm:$0xf]
    %v119 = vld [vmem:[#allocation5 + $0xc4] sm:$0xff]
    %v120 = vld [vmem:[#allocation5 + $0xcc] sm:$0xff]
    %v121 = vld [vmem:[#allocation5 + $0xd4] sm:$0xff]
    %v122 = vld [vmem:[#allocation5 + $0xdc] sm:$0xf]
    %v127 = vunpack.c.l.b16 %v87
    %v128 = vunpack.c.l.b16 %v88
    %v129 = vunpack.c.l.b16 %v89
    %v130 = vunpack.c.l.b16 %v90
    %v131 = vpack.c.b16 %v128, %v127
    %v132 = vpack.c.b16 %v130, %v129
    %v165 = vunpack.c.l.b16 %v91
    %v166 = vunpack.c.h.b16 %v91
    %v167 = vunpack.c.l.b16 %v92
    %v168 = vunpack.c.h.b16 %v92
    %v169 = vunpack.c.l.b16 %v93
    %v170 = vunpack.c.h.b16 %v93
    %v171 = vunpack.c.l.b16 %v94
    %v172 = vunpack.c.l.b16 %v95
    %v173 = vunpack.c.h.b16 %v95
    %v174 = vunpack.c.l.b16 %v96
    %v175 = vunpack.c.h.b16 %v96
    %v176 = vunpack.c.l.b16 %v97
    %v177 = vunpack.c.h.b16 %v97
    %v178 = vunpack.c.l.b16 %v98
    %v179 = vunpack.c.l.b16 %v99
    %v180 = vunpack.c.h.b16 %v99
    %v181 = vunpack.c.l.b16 %v100
    %v182 = vunpack.c.h.b16 %v100
    %v183 = vunpack.c.l.b16 %v101
    %v184 = vunpack.c.h.b16 %v101
    %v185 = vunpack.c.l.b16 %v102
    %v186 = vunpack.c.l.b16 %v103
    %v187 = vunpack.c.h.b16 %v103
    %v188 = vunpack.c.l.b16 %v104
    %v189 = vunpack.c.h.b16 %v104
    %v190 = vunpack.c.l.b16 %v105
    %v191 = vunpack.c.h.b16 %v105
    %v192 = vunpack.c.l.b16 %v106
    %v193 = vunpack.c.l.b16 %v107
    %v194 = vunpack.c.h.b16 %v107
    %v195 = vunpack.c.l.b16 %v108
    %v196 = vunpack.c.h.b16 %v108
    %v197 = vunpack.c.l.b16 %v109
    %v198 = vunpack.c.h.b16 %v109
    %v199 = vunpack.c.l.b16 %v110
    %v200 = vunpack.c.l.b16 %v111
    %v201 = vunpack.c.h.b16 %v111
    %v202 = vunpack.c.l.b16 %v112
    %v203 = vunpack.c.h.b16 %v112
    %v204 = vunpack.c.l.b16 %v113
    %v205 = vunpack.c.h.b16 %v113
    %v206 = vunpack.c.l.b16 %v114
    %v207 = vunpack.c.l.b16 %v115
    %v208 = vunpack.c.h.b16 %v115
    %v209 = vunpack.c.l.b16 %v116
    %v210 = vunpack.c.h.b16 %v116
    %v211 = vunpack.c.l.b16 %v117
    %v212 = vunpack.c.h.b16 %v117
    %v213 = vunpack.c.l.b16 %v118
    %v214 = vunpack.c.l.b16 %v119
    %v215 = vunpack.c.h.b16 %v119
    %v216 = vunpack.c.l.b16 %v120
    %v217 = vunpack.c.h.b16 %v120
    %v218 = vunpack.c.l.b16 %v121
    %v219 = vunpack.c.h.b16 %v121
    %v220 = vunpack.c.l.b16 %v122
    %v221 = vpack.c.b16 %v172, %v165
    %v222 = vpack.c.b16 %v173, %v166
    %v223 = vpack.c.b16 %v174, %v167
    %v224 = vpack.c.b16 %v175, %v168
    %v225 = vpack.c.b16 %v176, %v169
    %v226 = vpack.c.b16 %v177, %v170
    %v227 = vpack.c.b16 %v178, %v171
    %v228 = vpack.c.b16 %v186, %v179
    %v229 = vpack.c.b16 %v187, %v180
    %v230 = vpack.c.b16 %v188, %v181
    %v231 = vpack.c.b16 %v189, %v182
    %v232 = vpack.c.b16 %v190, %v183
    %v233 = vpack.c.b16 %v191, %v184
    %v234 = vpack.c.b16 %v192, %v185
    %v235 = vpack.c.b16 %v200, %v193
    %v236 = vpack.c.b16 %v201, %v194
    %v237 = vpack.c.b16 %v202, %v195
    %v238 = vpack.c.b16 %v203, %v196
    %v239 = vpack.c.b16 %v204, %v197
    %v240 = vpack.c.b16 %v205, %v198
    %v241 = vpack.c.b16 %v206, %v199
    %v242 = vpack.c.b16 %v214, %v207
    %v243 = vpack.c.b16 %v215, %v208
    %v244 = vpack.c.b16 %v216, %v209
    %v245 = vpack.c.b16 %v217, %v210
    %v246 = vpack.c.b16 %v218, %v211
    %v247 = vpack.c.b16 %v219, %v212
    %v248 = vpack.c.b16 %v220, %v213
    %vm277 = vcmask 523264
    %v279 = vsel %vm277, %v131, 0
    %v282 = vsel %vm277, %v132, 0
    %284 = vmatprep.subr.bf16.mxu0 %v222
    %285 = vmatpush1.bf16.msra.mxu0 %v221
    %286 = vmatprep.subr.bf16.mxu0 %v229
    %287 = vmatpush1.bf16.msra.mxu0 %v228
    %288 = vmatprep.subr.bf16.mxu0 %v236
    %289 = vmatpush1.bf16.msra.mxu0 %v235
    %290 = vmatprep.subr.bf16.mxu0 %v243
    %291 = vmatpush1.bf16.msra.mxu0 %v242
    %292 = vmatprep.subr.bf16.mxu0 0
    %293 = vmatpush1.bf16.msra.mxu0 0
    %294 = vmatprep.subr.bf16.mxu0 0
    %295 = vmatpush1.bf16.msra.mxu0 0
    %296 = vmatprep.subr.bf16.mxu0 0
    %297 = vmatpush1.bf16.msra.mxu0 0
    %298 = vmatprep.subr.bf16.mxu0 0
    %299 = vmatpush1.bf16.msra.mxu0 0
    %300 = vmatprep.subr.bf16.mxu0 0
    %301 = vmatpush1.bf16.msra.mxu0 0
    %302 = vmatprep.subr.bf16.mxu0 0
    %303 = vmatpush1.bf16.msra.mxu0 0
    %304 = vmatprep.subr.bf16.mxu0 0
    %305 = vmatpush1.bf16.msra.mxu0 0
    %306 = vmatprep.subr.bf16.mxu0 0
    %307 = vmatpush1.bf16.msra.mxu0 0
    %308 = vmatprep.subr.bf16.mxu0 0
    %309 = vmatpush1.bf16.msra.mxu0 0
    %310 = vmatprep.subr.bf16.mxu0 0
    %311 = vmatpush1.bf16.msra.mxu0 0
    %312 = vmatprep.subr.bf16.mxu0 0
    %313 = vmatpush1.bf16.msra.mxu0 0
    %314 = vmatprep.subr.bf16.mxu0 0
    %315 = vmatpush1.bf16.msra.mxu0 0
    %316 = vmatprep.mubr.bf16.mxu0 0
    %317 = vmatmul.mubr.bf16.gmra.mrb[0].mxu0 %v279
    %v318 = vpop.f32.mrb[0].mxu0
    %v319 = vadd.f32 0.0, %v318
    %v320 = vpop.f32.mrb[0].mxu0
    %v321 = vadd.f32 0.0, %v320
    %v322 = vpop.f32.mrb[0].mxu0
    %v323 = vadd.f32 0.0, %v322
    %v324 = vpop.f32.mrb[0].mxu0
    %v325 = vadd.f32 0.0, %v324
    %326 = vmatprep.mubr.bf16.mxu0 0
    %327 = vmatmul.mubr.bf16.gmra.mrb[0].mxu0 %v282
    %v328 = vpop.f32.mrb[0].mxu0
    %v329 = vadd.f32 0.0, %v328
    %v330 = vpop.f32.mrb[0].mxu0
    %v331 = vadd.f32 0.0, %v330
    %v332 = vpop.f32.mrb[0].mxu0
    %v333 = vadd.f32 0.0, %v332
    %v334 = vpop.f32.mrb[0].mxu0
    %v335 = vadd.f32 0.0, %v334
    %336 = vdwg.mxu0
    %337 = vmatprep.subr.bf16.mxu0 %v224
    %338 = vmatpush1.bf16.msra.mxu0 %v223
    %339 = vmatprep.subr.bf16.mxu0 %v231
    %340 = vmatpush1.bf16.msra.mxu0 %v230
    %341 = vmatprep.subr.bf16.mxu0 %v238
    %342 = vmatpush1.bf16.msra.mxu0 %v237
    %343 = vmatprep.subr.bf16.mxu0 %v245
    %344 = vmatpush1.bf16.msra.mxu0 %v244
    %345 = vmatprep.subr.bf16.mxu0 0
    %346 = vmatpush1.bf16.msra.mxu0 0
    %347 = vmatprep.subr.bf16.mxu0 0
    %348 = vmatpush1.bf16.msra.mxu0 0
    %349 = vmatprep.subr.bf16.mxu0 0
    %350 = vmatpush1.bf16.msra.mxu0 0
    %351 = vmatprep.subr.bf16.mxu0 0
    %352 = vmatpush1.bf16.msra.mxu0 0
    %353 = vmatprep.subr.bf16.mxu0 0
    %354 = vmatpush1.bf16.msra.mxu0 0
    %355 = vmatprep.subr.bf16.mxu0 0
    %356 = vmatpush1.bf16.msra.mxu0 0
    %357 = vmatprep.subr.bf16.mxu0 0
    %358 = vmatpush1.bf16.msra.mxu0 0
    %359 = vmatprep.subr.bf16.mxu0 0
    %360 = vmatpush1.bf16.msra.mxu0 0
    %361 = vmatprep.subr.bf16.mxu0 0
    %362 = vmatpush1.bf16.msra.mxu0 0
    %363 = vmatprep.subr.bf16.mxu0 0
    %364 = vmatpush1.bf16.msra.mxu0 0
    %365 = vmatprep.subr.bf16.mxu0 0
    %366 = vmatpush1.bf16.msra.mxu0 0
    %367 = vmatprep.subr.bf16.mxu0 0
    %368 = vmatpush1.bf16.msra.mxu0 0
    %369 = vmatprep.mubr.bf16.mxu0 0
    %370 = vmatmul.mubr.bf16.gmra.mrb[0].mxu0 %v279
    %v371 = vpop.f32.mrb[0].mxu0
    %v372 = vadd.f32 0.0, %v371
    %v373 = vpop.f32.mrb[0].mxu0
    %v374 = vadd.f32 0.0, %v373
    %v375 = vpop.f32.mrb[0].mxu0
    %v376 = vadd.f32 0.0, %v375
    %v377 = vpop.f32.mrb[0].mxu0
    %v378 = vadd.f32 0.0, %v377
    %379 = vmatprep.mubr.bf16.mxu0 0
    %380 = vmatmul.mubr.bf16.gmra.mrb[0].mxu0 %v282
    %v381 = vpop.f32.mrb[0].mxu0
    %v382 = vadd.f32 0.0, %v381
    %v383 = vpop.f32.mrb[0].mxu0
    %v384 = vadd.f32 0.0, %v383
    %v385 = vpop.f32.mrb[0].mxu0
    %v386 = vadd.f32 0.0, %v385
    %v387 = vpop.f32.mrb[0].mxu0
    %v388 = vadd.f32 0.0, %v387
    %389 = vdwg.mxu0
    %390 = vmatprep.subr.bf16.mxu0 %v226
    %391 = vmatpush1.bf16.msra.mxu0 %v225
    %392 = vmatprep.subr.bf16.mxu0 %v233
    %393 = vmatpush1.bf16.msra.mxu0 %v232
    %394 = vmatprep.subr.bf16.mxu0 %v240
    %395 = vmatpush1.bf16.msra.mxu0 %v239
    %396 = vmatprep.subr.bf16.mxu0 %v247
    %397 = vmatpush1.bf16.msra.mxu0 %v246
    %398 = vmatprep.subr.bf16.mxu0 0
    %399 = vmatpush1.bf16.msra.mxu0 0
    %400 = vmatprep.subr.bf16.mxu0 0
    %401 = vmatpush1.bf16.msra.mxu0 0
    %402 = vmatprep.subr.bf16.mxu0 0
    %403 = vmatpush1.bf16.msra.mxu0 0
    %404 = vmatprep.subr.bf16.mxu0 0
    %405 = vmatpush1.bf16.msra.mxu0 0
    %406 = vmatprep.subr.bf16.mxu0 0
    %407 = vmatpush1.bf16.msra.mxu0 0
    %408 = vmatprep.subr.bf16.mxu0 0
    %409 = vmatpush1.bf16.msra.mxu0 0
    %410 = vmatprep.subr.bf16.mxu0 0
    %411 = vmatpush1.bf16.msra.mxu0 0
    %412 = vmatprep.subr.bf16.mxu0 0
    %413 = vmatpush1.bf16.msra.mxu0 0
    %414 = vmatprep.subr.bf16.mxu0 0
    %415 = vmatpush1.bf16.msra.mxu0 0
    %416 = vmatprep.subr.bf16.mxu0 0
    %417 = vmatpush1.bf16.msra.mxu0 0
    %418 = vmatprep.subr.bf16.mxu0 0
    %419 = vmatpush1.bf16.msra.mxu0 0
    %420 = vmatprep.subr.bf16.mxu0 0
    %421 = vmatpush1.bf16.msra.mxu0 0
    %422 = vmatprep.mubr.bf16.mxu0 0
    %423 = vmatmul.mubr.bf16.gmra.mrb[0].mxu0 %v279
    %v424 = vpop.f32.mrb[0].mxu0
    %v425 = vadd.f32 0.0, %v424
    %v426 = vpop.f32.mrb[0].mxu0
    %v427 = vadd.f32 0.0, %v426
    %v428 = vpop.f32.mrb[0].mxu0
    %v429 = vadd.f32 0.0, %v428
    %v430 = vpop.f32.mrb[0].mxu0
    %v431 = vadd.f32 0.0, %v430
    %432 = vmatprep.mubr.bf16.mxu0 0
    %433 = vmatmul.mubr.bf16.gmra.mrb[0].mxu0 %v282
    %v434 = vpop.f32.mrb[0].mxu0
    %v435 = vadd.f32 0.0, %v434
    %v436 = vpop.f32.mrb[0].mxu0
    %v437 = vadd.f32 0.0, %v436
    %v438 = vpop.f32.mrb[0].mxu0
    %v439 = vadd.f32 0.0, %v438
    %v440 = vpop.f32.mrb[0].mxu0
    %v441 = vadd.f32 0.0, %v440
    %442 = vdwg.mxu0
    %443 = vmatprep.subr.bf16.mxu0 0
    %444 = vmatpush1.bf16.msra.mxu0 %v227
    %445 = vmatprep.subr.bf16.mxu0 0
    %446 = vmatpush1.bf16.msra.mxu0 %v234
    %447 = vmatprep.subr.bf16.mxu0 0
    %448 = vmatpush1.bf16.msra.mxu0 %v241
    %449 = vmatprep.subr.bf16.mxu0 0
    %450 = vmatpush1.bf16.msra.mxu0 %v248
    %451 = vmatprep.subr.bf16.mxu0 0
    %452 = vmatpush1.bf16.msra.mxu0 0
    %453 = vmatprep.subr.bf16.mxu0 0
    %454 = vmatpush1.bf16.msra.mxu0 0
    %455 = vmatprep.subr.bf16.mxu0 0
    %456 = vmatpush1.bf16.msra.mxu0 0
    %457 = vmatprep.subr.bf16.mxu0 0
    %458 = vmatpush1.bf16.msra.mxu0 0
    %459 = vmatprep.subr.bf16.mxu0 0
    %460 = vmatpush1.bf16.msra.mxu0 0
    %461 = vmatprep.subr.bf16.mxu0 0
    %462 = vmatpush1.bf16.msra.mxu0 0
    %463 = vmatprep.subr.bf16.mxu0 0
    %464 = vmatpush1.bf16.msra.mxu0 0
    %465 = vmatprep.subr.bf16.mxu0 0
    %466 = vmatpush1.bf16.msra.mxu0 0
    %467 = vmatprep.subr.bf16.mxu0 0
    %468 = vmatpush1.bf16.msra.mxu0 0
    %469 = vmatprep.subr.bf16.mxu0 0
    %470 = vmatpush1.bf16.msra.mxu0 0
    %471 = vmatprep.subr.bf16.mxu0 0
    %472 = vmatpush1.bf16.msra.mxu0 0
    %473 = vmatprep.subr.bf16.mxu0 0
    %474 = vmatpush1.bf16.msra.mxu0 0
    %475 = vmatprep.mubr.bf16.mxu0 0
    %476 = vmatmul.mubr.bf16.gmra.mrb[0].mxu0 %v279
    %v477 = vpop.f32.mrb[0].mxu0
    %v478 = vadd.f32 0.0, %v477
    %v479 = vpop.f32.mrb[0].mxu0
    %v480 = vpop.f32.mrb[0].mxu0
    %v481 = vadd.f32 0.0, %v480
    %v482 = vpop.f32.mrb[0].mxu0
    %483 = vmatprep.mubr.bf16.mxu0 0
    %484 = vmatmul.mubr.bf16.gmra.mrb[0].mxu0 %v282
    %v485 = vpop.f32.mrb[0].mxu0
    %v486 = vadd.f32 0.0, %v485
    %v487 = vpop.f32.mrb[0].mxu0
    %v488 = vpop.f32.mrb[0].mxu0
    %v489 = vadd.f32 0.0, %v488
    %v490 = vpop.f32.mrb[0].mxu0
    %491 = vdwg.mxu0
    %v492 = vld [vmem:[%s3] sm:$0x1]
    %v493 = vld [vmem:[#allocation2] sm:$0xff]
    %v494 = vld [vmem:[#allocation2 + $0x8] sm:$0xff]
    %v495 = vld [vmem:[#allocation2 + $0x10] sm:$0xff]
    %v496 = vld [vmem:[#allocation2 + $0x18] sm:$0xff]
    %vm497 = vcmask 261120
    %v499 = vsel %vm497, %v493, 0
    %v502 = vsel %vm497, %v494, 0
    %v505 = vsel %vm497, %v495, 0
    %v508 = vsel %vm497, %v496, 0
    %510 = vmatprep.subr.mxu0 0.0
    %511 = vmatpush1.msra.mxu0 %v319
    %512 = vmatprep.subr.mxu0 0.0
    %513 = vmatpush1.msra.mxu0 %v323
    %514 = vmatprep.subr.mxu0 0.0
    %515 = vmatpush1.msra.mxu0 %v329
    %516 = vmatprep.subr.mxu0 0.0
    %517 = vmatpush1.msra.mxu0 %v333
    %518 = vmatprep.subr.mxu0 0.0
    %519 = vmatpush1.msra.mxu0 0.0
    %520 = vmatprep.subr.mxu0 0.0
    %521 = vmatpush1.msra.mxu0 0.0
    %522 = vmatprep.subr.mxu0 0.0
    %523 = vmatpush1.msra.mxu0 0.0
    %524 = vmatprep.subr.mxu0 0.0
    %525 = vmatpush1.msra.mxu0 0.0
    %526 = vmatprep.subr.mxu0 0.0
    %527 = vmatpush1.msra.mxu0 0.0
    %528 = vmatprep.subr.mxu0 0.0
    %529 = vmatpush1.msra.mxu0 0.0
    %530 = vmatprep.subr.mxu0 0.0
    %531 = vmatpush1.msra.mxu0 0.0
    %532 = vmatprep.subr.mxu0 0.0
    %533 = vmatpush1.msra.mxu0 0.0
    %534 = vmatprep.subr.mxu0 0.0
    %535 = vmatpush1.msra.mxu0 0.0
    %536 = vmatprep.subr.mxu0 0.0
    %537 = vmatpush1.msra.mxu0 0.0
    %538 = vmatprep.subr.mxu0 0.0
    %539 = vmatpush1.msra.mxu0 0.0
    %540 = vmatprep.subr.mxu0 0.0
    %541 = vmatpush1.msra.mxu0 0.0
    %542 = vmatprep.subr.mxu0 0.0
    %543 = vmatpush1.msra.mxu0 0.0
    %544 = vmatprep.subr.mxu0 0.0
    %545 = vmatpush1.msra.mxu0 0.0
    %546 = vmatprep.subr.mxu0 0.0
    %547 = vmatpush1.msra.mxu0 0.0
    %548 = vmatprep.subr.mxu0 0.0
    %549 = vmatpush1.msra.mxu0 0.0
    %550 = vmatprep.subr.mxu0 0.0
    %551 = vmatpush1.msra.mxu0 0.0
    %552 = vmatprep.subr.mxu0 0.0
    %553 = vmatpush1.msra.mxu0 0.0
    %554 = vmatprep.subr.mxu0 0.0
    %555 = vmatpush1.msra.mxu0 0.0
    %556 = vmatprep.subr.mxu0 0.0
    %557 = vmatpush1.msra.mxu0 0.0
    %558 = vmatprep.subr.mxu0 0.0
    %559 = vmatpush1.msra.mxu0 0.0
    %560 = vmatprep.subr.mxu0 0.0
    %561 = vmatpush1.msra.mxu0 0.0
    %562 = vmatprep.subr.mxu0 0.0
    %563 = vmatpush1.msra.mxu0 0.0
    %564 = vmatprep.subr.mxu0 0.0
    %565 = vmatpush1.msra.mxu0 0.0
    %566 = vmatprep.subr.mxu0 0.0
    %567 = vmatpush1.msra.mxu0 0.0
    %568 = vmatprep.subr.mxu0 0.0
    %569 = vmatpush1.msra.mxu0 0.0
    %570 = vmatprep.subr.mxu0 0.0
    %571 = vmatpush1.msra.mxu0 0.0
    %572 = vmatprep.subr.mxu0 0.0
    %573 = vmatpush1.msra.mxu0 0.0
    %574 = vmatprep.mubr.f32.mxu0 0.0
    %575 = vmatmul.mubr.f32.gmra.mrb[0].mxu0 %v499
    %v576 = vpop.f32.mrb[0].mxu0
    %v577 = vadd.f32 0.0, %v576
    %v578 = vpop.f32.mrb[0].mxu0
    %579 = vmatprep.mubr.f32.mxu0 0.0
    %580 = vmatmul.mubr.f32.gmra.mrb[0].mxu0 %v502
    %v581 = vpop.f32.mrb[0].mxu0
    %v582 = vadd.f32 0.0, %v581
    %v583 = vpop.f32.mrb[0].mxu0
    %584 = vmatprep.mubr.f32.mxu0 0.0
    %585 = vmatmul.mubr.f32.gmra.mrb[0].mxu0 %v505
    %v586 = vpop.f32.mrb[0].mxu0
    %v587 = vadd.f32 0.0, %v586
    %v588 = vpop.f32.mrb[0].mxu0
    %589 = vmatprep.mubr.f32.mxu0 0.0
    %590 = vmatmul.mubr.f32.gmra.mrb[0].mxu0 %v508
    %v591 = vpop.f32.mrb[0].mxu0
    %v592 = vadd.f32 0.0, %v591
    %v593 = vpop.f32.mrb[0].mxu0
    %594 = vdwg.mxu0
    %v596 = vlaneseq
    %v597 = vshrl.u32 %v596, 7
    %v598 = vsub.s32 0, %v597
    %v599 = vrot.slane %v492, %v598
    %v601 = vadd.f32 %v599, %v577
    %v602 = vadd.f32 %v599, %v582
    %v603 = vadd.f32 %v599, %v587
    %v604 = vadd.f32 %v599, %v592
    %s605 = scalar_lea.vmem [#allocation2], 32
    %v606 = vld [vmem:[%s605] sm:$0xff]
    %v607 = vld [vmem:[%s605 + $0x8] sm:$0xff]
    %v608 = vld [vmem:[%s605 + $0x10] sm:$0xff]
    %v609 = vld [vmem:[%s605 + $0x18] sm:$0xff]
    %v611 = vsel %vm497, %v606, 0
    %v614 = vsel %vm497, %v607, 0
    %v617 = vsel %vm497, %v608, 0
    %v620 = vsel %vm497, %v609, 0
    %622 = vmatprep.subr.mxu0 0.0
    %623 = vmatpush1.msra.mxu0 %v321
    %624 = vmatprep.subr.mxu0 0.0
    %625 = vmatpush1.msra.mxu0 %v325
    %626 = vmatprep.subr.mxu0 0.0
    %627 = vmatpush1.msra.mxu0 %v331
    %628 = vmatprep.subr.mxu0 0.0
    %629 = vmatpush1.msra.mxu0 %v335
    %630 = vmatprep.subr.mxu0 0.0
    %631 = vmatpush1.msra.mxu0 0.0
    %632 = vmatprep.subr.mxu0 0.0
    %633 = vmatpush1.msra.mxu0 0.0
    %634 = vmatprep.subr.mxu0 0.0
    %635 = vmatpush1.msra.mxu0 0.0
    %636 = vmatprep.subr.mxu0 0.0
    %637 = vmatpush1.msra.mxu0 0.0
    %638 = vmatprep.subr.mxu0 0.0
    %639 = vmatpush1.msra.mxu0 0.0
    %640 = vmatprep.subr.mxu0 0.0
    %641 = vmatpush1.msra.mxu0 0.0
    %642 = vmatprep.subr.mxu0 0.0
    %643 = vmatpush1.msra.mxu0 0.0
    %644 = vmatprep.subr.mxu0 0.0
    %645 = vmatpush1.msra.mxu0 0.0
    %646 = vmatprep.subr.mxu0 0.0
    %647 = vmatpush1.msra.mxu0 0.0
    %648 = vmatprep.subr.mxu0 0.0
    %649 = vmatpush1.msra.mxu0 0.0
    %650 = vmatprep.subr.mxu0 0.0
    %651 = vmatpush1.msra.mxu0 0.0
    %652 = vmatprep.subr.mxu0 0.0
    %653 = vmatpush1.msra.mxu0 0.0
    %654 = vmatprep.subr.mxu0 0.0
    %655 = vmatpush1.msra.mxu0 0.0
    %656 = vmatprep.subr.mxu0 0.0
    %657 = vmatpush1.msra.mxu0 0.0
    %658 = vmatprep.subr.mxu0 0.0
    %659 = vmatpush1.msra.mxu0 0.0
    %660 = vmatprep.subr.mxu0 0.0
    %661 = vmatpush1.msra.mxu0 0.0
    %662 = vmatprep.subr.mxu0 0.0
    %663 = vmatpush1.msra.mxu0 0.0
    %664 = vmatprep.subr.mxu0 0.0
    %665 = vmatpush1.msra.mxu0 0.0
    %666 = vmatprep.subr.mxu0 0.0
    %667 = vmatpush1.msra.mxu0 0.0
    %668 = vmatprep.subr.mxu0 0.0
    %669 = vmatpush1.msra.mxu0 0.0
    %670 = vmatprep.subr.mxu0 0.0
    %671 = vmatpush1.msra.mxu0 0.0
    %672 = vmatprep.subr.mxu0 0.0
    %673 = vmatpush1.msra.mxu0 0.0
    %674 = vmatprep.subr.mxu0 0.0
    %675 = vmatpush1.msra.mxu0 0.0
    %676 = vmatprep.subr.mxu0 0.0
    %677 = vmatpush1.msra.mxu0 0.0
    %678 = vmatprep.subr.mxu0 0.0
    %679 = vmatpush1.msra.mxu0 0.0
    %680 = vmatprep.subr.mxu0 0.0
    %681 = vmatpush1.msra.mxu0 0.0
    %682 = vmatprep.subr.mxu0 0.0
    %683 = vmatpush1.msra.mxu0 0.0
    %684 = vmatprep.subr.mxu0 0.0
    %685 = vmatpush1.msra.mxu0 0.0
    %686 = vmatprep.mubr.f32.mxu0 0.0
    %687 = vmatmul.mubr.f32.gmra.mrb[0].mxu0 %v611
    %v688 = vpop.f32.mrb[0].mxu0
    %v689 = vadd.f32 0.0, %v688
    %v690 = vpop.f32.mrb[0].mxu0
    %691 = vmatprep.mubr.f32.mxu0 0.0
    %692 = vmatmul.mubr.f32.gmra.mrb[0].mxu0 %v614
    %v693 = vpop.f32.mrb[0].mxu0
    %v694 = vadd.f32 0.0, %v693
    %v695 = vpop.f32.mrb[0].mxu0
    %696 = vmatprep.mubr.f32.mxu0 0.0
    %697 = vmatmul.mubr.f32.gmra.mrb[0].mxu0 %v617
    %v698 = vpop.f32.mrb[0].mxu0
    %v699 = vadd.f32 0.0, %v698
    %v700 = vpop.f32.mrb[0].mxu0
    %701 = vmatprep.mubr.f32.mxu0 0.0
    %702 = vmatmul.mubr.f32.gmra.mrb[0].mxu0 %v620
    %v703 = vpop.f32.mrb[0].mxu0
    %v704 = vadd.f32 0.0, %v703
    %v705 = vpop.f32.mrb[0].mxu0
    %706 = vdwg.mxu0
    %v707 = vadd.f32 %v601, %v689
    %v708 = vadd.f32 %v602, %v694
    %v709 = vadd.f32 %v603, %v699
    %v710 = vadd.f32 %v604, %v704
    %s711 = scalar_lea.vmem [#allocation2], 64
    %v712 = vld [vmem:[%s711] sm:$0xff]
    %v713 = vld [vmem:[%s711 + $0x8] sm:$0xff]
    %v714 = vld [vmem:[%s711 + $0x10] sm:$0xff]
    %v715 = vld [vmem:[%s711 + $0x18] sm:$0xff]
    %v717 = vsel %vm497, %v712, 0
    %v720 = vsel %vm497, %v713, 0
    %v723 = vsel %vm497, %v714, 0
    %v726 = vsel %vm497, %v715, 0
    %728 = vmatprep.subr.mxu0 0.0
    %729 = vmatpush1.msra.mxu0 %v372
    %730 = vmatprep.subr.mxu0 0.0
    %731 = vmatpush1.msra.mxu0 %v376
    %732 = vmatprep.subr.mxu0 0.0
    %733 = vmatpush1.msra.mxu0 %v382
    %734 = vmatprep.subr.mxu0 0.0
    %735 = vmatpush1.msra.mxu0 %v386
    %736 = vmatprep.subr.mxu0 0.0
    %737 = vmatpush1.msra.mxu0 0.0
    %738 = vmatprep.subr.mxu0 0.0
    %739 = vmatpush1.msra.mxu0 0.0
    %740 = vmatprep.subr.mxu0 0.0
    %741 = vmatpush1.msra.mxu0 0.0
    %742 = vmatprep.subr.mxu0 0.0
    %743 = vmatpush1.msra.mxu0 0.0
    %744 = vmatprep.subr.mxu0 0.0
    %745 = vmatpush1.msra.mxu0 0.0
    %746 = vmatprep.subr.mxu0 0.0
    %747 = vmatpush1.msra.mxu0 0.0
    %748 = vmatprep.subr.mxu0 0.0
    %749 = vmatpush1.msra.mxu0 0.0
    %750 = vmatprep.subr.mxu0 0.0
    %751 = vmatpush1.msra.mxu0 0.0
    %752 = vmatprep.subr.mxu0 0.0
    %753 = vmatpush1.msra.mxu0 0.0
    %754 = vmatprep.subr.mxu0 0.0
    %755 = vmatpush1.msra.mxu0 0.0
    %756 = vmatprep.subr.mxu0 0.0
    %757 = vmatpush1.msra.mxu0 0.0
    %758 = vmatprep.subr.mxu0 0.0
    %759 = vmatpush1.msra.mxu0 0.0
    %760 = vmatprep.subr.mxu0 0.0
    %761 = vmatpush1.msra.mxu0 0.0
    %762 = vmatprep.subr.mxu0 0.0
    %763 = vmatpush1.msra.mxu0 0.0
    %764 = vmatprep.subr.mxu0 0.0
    %765 = vmatpush1.msra.mxu0 0.0
    %766 = vmatprep.subr.mxu0 0.0
    %767 = vmatpush1.msra.mxu0 0.0
    %768 = vmatprep.subr.mxu0 0.0
    %769 = vmatpush1.msra.mxu0 0.0
    %770 = vmatprep.subr.mxu0 0.0
    %771 = vmatpush1.msra.mxu0 0.0
    %772 = vmatprep.subr.mxu0 0.0
    %773 = vmatpush1.msra.mxu0 0.0
    %774 = vmatprep.subr.mxu0 0.0
    %775 = vmatpush1.msra.mxu0 0.0
    %776 = vmatprep.subr.mxu0 0.0
    %777 = vmatpush1.msra.mxu0 0.0
    %778 = vmatprep.subr.mxu0 0.0
    %779 = vmatpush1.msra.mxu0 0.0
    %780 = vmatprep.subr.mxu0 0.0
    %781 = vmatpush1.msra.mxu0 0.0
    %782 = vmatprep.subr.mxu0 0.0
    %783 = vmatpush1.msra.mxu0 0.0
    %784 = vmatprep.subr.mxu0 0.0
    %785 = vmatpush1.msra.mxu0 0.0
    %786 = vmatprep.subr.mxu0 0.0
    %787 = vmatpush1.msra.mxu0 0.0
    %788 = vmatprep.subr.mxu0 0.0
    %789 = vmatpush1.msra.mxu0 0.0
    %790 = vmatprep.subr.mxu0 0.0
    %791 = vmatpush1.msra.mxu0 0.0
    %792 = vmatprep.mubr.f32.mxu0 0.0
    %793 = vmatmul.mubr.f32.gmra.mrb[0].mxu0 %v717
    %v794 = vpop.f32.mrb[0].mxu0
    %v795 = vadd.f32 0.0, %v794
    %v796 = vpop.f32.mrb[0].mxu0
    %797 = vmatprep.mubr.f32.mxu0 0.0
    %798 = vmatmul.mubr.f32.gmra.mrb[0].mxu0 %v720
    %v799 = vpop.f32.mrb[0].mxu0
    %v800 = vadd.f32 0.0, %v799
    %v801 = vpop.f32.mrb[0].mxu0
    %802 = vmatprep.mubr.f32.mxu0 0.0
    %803 = vmatmul.mubr.f32.gmra.mrb[0].mxu0 %v723
    %v804 = vpop.f32.mrb[0].mxu0
    %v805 = vadd.f32 0.0, %v804
    %v806 = vpop.f32.mrb[0].mxu0
    %807 = vmatprep.mubr.f32.mxu0 0.0
    %808 = vmatmul.mubr.f32.gmra.mrb[0].mxu0 %v726
    %v809 = vpop.f32.mrb[0].mxu0
    %v810 = vadd.f32 0.0, %v809
    %v811 = vpop.f32.mrb[0].mxu0
    %812 = vdwg.mxu0
    %v813 = vadd.f32 %v707, %v795
    %v814 = vadd.f32 %v708, %v800
    %v815 = vadd.f32 %v709, %v805
    %v816 = vadd.f32 %v710, %v810
    %s817 = scalar_lea.vmem [#allocation2], 96
    %v818 = vld [vmem:[%s817] sm:$0xff]
    %v819 = vld [vmem:[%s817 + $0x8] sm:$0xff]
    %v820 = vld [vmem:[%s817 + $0x10] sm:$0xff]
    %v821 = vld [vmem:[%s817 + $0x18] sm:$0xff]
    %v823 = vsel %vm497, %v818, 0
    %v826 = vsel %vm497, %v819, 0
    %v829 = vsel %vm497, %v820, 0
    %v832 = vsel %vm497, %v821, 0
    %834 = vmatprep.subr.mxu0 0.0
    %835 = vmatpush1.msra.mxu0 %v374
    %836 = vmatprep.subr.mxu0 0.0
    %837 = vmatpush1.msra.mxu0 %v378
    %838 = vmatprep.subr.mxu0 0.0
    %839 = vmatpush1.msra.mxu0 %v384
    %840 = vmatprep.subr.mxu0 0.0
    %841 = vmatpush1.msra.mxu0 %v388
    %842 = vmatprep.subr.mxu0 0.0
    %843 = vmatpush1.msra.mxu0 0.0
    %844 = vmatprep.subr.mxu0 0.0
    %845 = vmatpush1.msra.mxu0 0.0
    %846 = vmatprep.subr.mxu0 0.0
    %847 = vmatpush1.msra.mxu0 0.0
    %848 = vmatprep.subr.mxu0 0.0
    %849 = vmatpush1.msra.mxu0 0.0
    %850 = vmatprep.subr.mxu0 0.0
    %851 = vmatpush1.msra.mxu0 0.0
    %852 = vmatprep.subr.mxu0 0.0
    %853 = vmatpush1.msra.mxu0 0.0
    %854 = vmatprep.subr.mxu0 0.0
    %855 = vmatpush1.msra.mxu0 0.0
    %856 = vmatprep.subr.mxu0 0.0
    %857 = vmatpush1.msra.mxu0 0.0
    %858 = vmatprep.subr.mxu0 0.0
    %859 = vmatpush1.msra.mxu0 0.0
    %860 = vmatprep.subr.mxu0 0.0
    %861 = vmatpush1.msra.mxu0 0.0
    %862 = vmatprep.subr.mxu0 0.0
    %863 = vmatpush1.msra.mxu0 0.0
    %864 = vmatprep.subr.mxu0 0.0
    %865 = vmatpush1.msra.mxu0 0.0
    %866 = vmatprep.subr.mxu0 0.0
    %867 = vmatpush1.msra.mxu0 0.0
    %868 = vmatprep.subr.mxu0 0.0
    %869 = vmatpush1.msra.mxu0 0.0
    %870 = vmatprep.subr.mxu0 0.0
    %871 = vmatpush1.msra.mxu0 0.0
    %872 = vmatprep.subr.mxu0 0.0
    %873 = vmatpush1.msra.mxu0 0.0
    %874 = vmatprep.subr.mxu0 0.0
    %875 = vmatpush1.msra.mxu0 0.0
    %876 = vmatprep.subr.mxu0 0.0
    %877 = vmatpush1.msra.mxu0 0.0
    %878 = vmatprep.subr.mxu0 0.0
    %879 = vmatpush1.msra.mxu0 0.0
    %880 = vmatprep.subr.mxu0 0.0
    %881 = vmatpush1.msra.mxu0 0.0
    %882 = vmatprep.subr.mxu0 0.0
    %883 = vmatpush1.msra.mxu0 0.0
    %884 = vmatprep.subr.mxu0 0.0
    %885 = vmatpush1.msra.mxu0 0.0
    %886 = vmatprep.subr.mxu0 0.0
    %887 = vmatpush1.msra.mxu0 0.0
    %888 = vmatprep.subr.mxu0 0.0
    %889 = vmatpush1.msra.mxu0 0.0
    %890 = vmatprep.subr.mxu0 0.0
    %891 = vmatpush1.msra.mxu0 0.0
    %892 = vmatprep.subr.mxu0 0.0
    %893 = vmatpush1.msra.mxu0 0.0
    %894 = vmatprep.subr.mxu0 0.0
    %895 = vmatpush1.msra.mxu0 0.0
    %896 = vmatprep.subr.mxu0 0.0
    %897 = vmatpush1.msra.mxu0 0.0
    %898 = vmatprep.mubr.f32.mxu0 0.0
    %899 = vmatmul.mubr.f32.gmra.mrb[0].mxu0 %v823
    %v900 = vpop.f32.mrb[0].mxu0
    %v901 = vadd.f32 0.0, %v900
    %v902 = vpop.f32.mrb[0].mxu0
    %903 = vmatprep.mubr.f32.mxu0 0.0
    %904 = vmatmul.mubr.f32.gmra.mrb[0].mxu0 %v826
    %v905 = vpop.f32.mrb[0].mxu0
    %v906 = vadd.f32 0.0, %v905
    %v907 = vpop.f32.mrb[0].mxu0
    %908 = vmatprep.mubr.f32.mxu0 0.0
    %909 = vmatmul.mubr.f32.gmra.mrb[0].mxu0 %v829
    %v910 = vpop.f32.mrb[0].mxu0
    %v911 = vadd.f32 0.0, %v910
    %v912 = vpop.f32.mrb[0].mxu0
    %913 = vmatprep.mubr.f32.mxu0 0.0
    %914 = vmatmul.mubr.f32.gmra.mrb[0].mxu0 %v832
    %v915 = vpop.f32.mrb[0].mxu0
    %v916 = vadd.f32 0.0, %v915
    %v917 = vpop.f32.mrb[0].mxu0
    %918 = vdwg.mxu0
    %v919 = vadd.f32 %v813, %v901
    %v920 = vadd.f32 %v814, %v906
    %v921 = vadd.f32 %v815, %v911
    %v922 = vadd.f32 %v816, %v916
    %s923 = scalar_lea.vmem [#allocation2], 128
    %v924 = vld [vmem:[%s923] sm:$0xff]
    %v925 = vld [vmem:[%s923 + $0x8] sm:$0xff]
    %v926 = vld [vmem:[%s923 + $0x10] sm:$0xff]
    %v927 = vld [vmem:[%s923 + $0x18] sm:$0xff]
    %v929 = vsel %vm497, %v924, 0
    %v932 = vsel %vm497, %v925, 0
    %v935 = vsel %vm497, %v926, 0
    %v938 = vsel %vm497, %v927, 0
    %940 = vmatprep.subr.mxu0 0.0
    %941 = vmatpush1.msra.mxu0 %v425
    %942 = vmatprep.subr.mxu0 0.0
    %943 = vmatpush1.msra.mxu0 %v429
    %944 = vmatprep.subr.mxu0 0.0
    %945 = vmatpush1.msra.mxu0 %v435
    %946 = vmatprep.subr.mxu0 0.0
    %947 = vmatpush1.msra.mxu0 %v439
    %948 = vmatprep.subr.mxu0 0.0
    %949 = vmatpush1.msra.mxu0 0.0
    %950 = vmatprep.subr.mxu0 0.0
    %951 = vmatpush1.msra.mxu0 0.0
    %952 = vmatprep.subr.mxu0 0.0
    %953 = vmatpush1.msra.mxu0 0.0
    %954 = vmatprep.subr.mxu0 0.0
    %955 = vmatpush1.msra.mxu0 0.0
    %956 = vmatprep.subr.mxu0 0.0
    %957 = vmatpush1.msra.mxu0 0.0
    %958 = vmatprep.subr.mxu0 0.0
    %959 = vmatpush1.msra.mxu0 0.0
    %960 = vmatprep.subr.mxu0 0.0
    %961 = vmatpush1.msra.mxu0 0.0
    %962 = vmatprep.subr.mxu0 0.0
    %963 = vmatpush1.msra.mxu0 0.0
    %964 = vmatprep.subr.mxu0 0.0
    %965 = vmatpush1.msra.mxu0 0.0
    %966 = vmatprep.subr.mxu0 0.0
    %967 = vmatpush1.msra.mxu0 0.0
    %968 = vmatprep.subr.mxu0 0.0
    %969 = vmatpush1.msra.mxu0 0.0
    %970 = vmatprep.subr.mxu0 0.0
    %971 = vmatpush1.msra.mxu0 0.0
    %972 = vmatprep.subr.mxu0 0.0
    %973 = vmatpush1.msra.mxu0 0.0
    %974 = vmatprep.subr.mxu0 0.0
    %975 = vmatpush1.msra.mxu0 0.0
    %976 = vmatprep.subr.mxu0 0.0
    %977 = vmatpush1.msra.mxu0 0.0
    %978 = vmatprep.subr.mxu0 0.0
    %979 = vmatpush1.msra.mxu0 0.0
    %980 = vmatprep.subr.mxu0 0.0
    %981 = vmatpush1.msra.mxu0 0.0
    %982 = vmatprep.subr.mxu0 0.0
    %983 = vmatpush1.msra.mxu0 0.0
    %984 = vmatprep.subr.mxu0 0.0
    %985 = vmatpush1.msra.mxu0 0.0
    %986 = vmatprep.subr.mxu0 0.0
    %987 = vmatpush1.msra.mxu0 0.0
    %988 = vmatprep.subr.mxu0 0.0
    %989 = vmatpush1.msra.mxu0 0.0
    %990 = vmatprep.subr.mxu0 0.0
    %991 = vmatpush1.msra.mxu0 0.0
    %992 = vmatprep.subr.mxu0 0.0
    %993 = vmatpush1.msra.mxu0 0.0
    %994 = vmatprep.subr.mxu0 0.0
    %995 = vmatpush1.msra.mxu0 0.0
    %996 = vmatprep.subr.mxu0 0.0
    %997 = vmatpush1.msra.mxu0 0.0
    %998 = vmatprep.subr.mxu0 0.0
    %999 = vmatpush1.msra.mxu0 0.0
    %1000 = vmatprep.subr.mxu0 0.0
    %1001 = vmatpush1.msra.mxu0 0.0
    %1002 = vmatprep.subr.mxu0 0.0
    %1003 = vmatpush1.msra.mxu0 0.0
    %1004 = vmatprep.mubr.f32.mxu0 0.0
    %1005 = vmatmul.mubr.f32.gmra.mrb[0].mxu0 %v929
    %v1006 = vpop.f32.mrb[0].mxu0
    %v1007 = vadd.f32 0.0, %v1006
    %v1008 = vpop.f32.mrb[0].mxu0
    %1009 = vmatprep.mubr.f32.mxu0 0.0
    %1010 = vmatmul.mubr.f32.gmra.mrb[0].mxu0 %v932
    %v1011 = vpop.f32.mrb[0].mxu0
    %v1012 = vadd.f32 0.0, %v1011
    %v1013 = vpop.f32.mrb[0].mxu0
    %1014 = vmatprep.mubr.f32.mxu0 0.0
    %1015 = vmatmul.mubr.f32.gmra.mrb[0].mxu0 %v935
    %v1016 = vpop.f32.mrb[0].mxu0
    %v1017 = vadd.f32 0.0, %v1016
    %v1018 = vpop.f32.mrb[0].mxu0
    %1019 = vmatprep.mubr.f32.mxu0 0.0
    %1020 = vmatmul.mubr.f32.gmra.mrb[0].mxu0 %v938
    %v1021 = vpop.f32.mrb[0].mxu0
    %v1022 = vadd.f32 0.0, %v1021
    %v1023 = vpop.f32.mrb[0].mxu0
    %1024 = vdwg.mxu0
    %v1025 = vadd.f32 %v919, %v1007
    %v1026 = vadd.f32 %v920, %v1012
    %v1027 = vadd.f32 %v921, %v1017
    %v1028 = vadd.f32 %v922, %v1022
    %s1029 = scalar_lea.vmem [#allocation2], 160
    %v1030 = vld [vmem:[%s1029] sm:$0xff]
    %v1031 = vld [vmem:[%s1029 + $0x8] sm:$0xff]
    %v1032 = vld [vmem:[%s1029 + $0x10] sm:$0xff]
    %v1033 = vld [vmem:[%s1029 + $0x18] sm:$0xff]
    %v1035 = vsel %vm497, %v1030, 0
    %v1038 = vsel %vm497, %v1031, 0
    %v1041 = vsel %vm497, %v1032, 0
    %v1044 = vsel %vm497, %v1033, 0
    %1046 = vmatprep.subr.mxu0 0.0
    %1047 = vmatpush1.msra.mxu0 %v427
    %1048 = vmatprep.subr.mxu0 0.0
    %1049 = vmatpush1.msra.mxu0 %v431
    %1050 = vmatprep.subr.mxu0 0.0
    %1051 = vmatpush1.msra.mxu0 %v437
    %1052 = vmatprep.subr.mxu0 0.0
    %1053 = vmatpush1.msra.mxu0 %v441
    %1054 = vmatprep.subr.mxu0 0.0
    %1055 = vmatpush1.msra.mxu0 0.0
    %1056 = vmatprep.subr.mxu0 0.0
    %1057 = vmatpush1.msra.mxu0 0.0
    %1058 = vmatprep.subr.mxu0 0.0
    %1059 = vmatpush1.msra.mxu0 0.0
    %1060 = vmatprep.subr.mxu0 0.0
    %1061 = vmatpush1.msra.mxu0 0.0
    %1062 = vmatprep.subr.mxu0 0.0
    %1063 = vmatpush1.msra.mxu0 0.0
    %1064 = vmatprep.subr.mxu0 0.0
    %1065 = vmatpush1.msra.mxu0 0.0
    %1066 = vmatprep.subr.mxu0 0.0
    %1067 = vmatpush1.msra.mxu0 0.0
    %1068 = vmatprep.subr.mxu0 0.0
    %1069 = vmatpush1.msra.mxu0 0.0
    %1070 = vmatprep.subr.mxu0 0.0
    %1071 = vmatpush1.msra.mxu0 0.0
    %1072 = vmatprep.subr.mxu0 0.0
    %1073 = vmatpush1.msra.mxu0 0.0
    %1074 = vmatprep.subr.mxu0 0.0
    %1075 = vmatpush1.msra.mxu0 0.0
    %1076 = vmatprep.subr.mxu0 0.0
    %1077 = vmatpush1.msra.mxu0 0.0
    %1078 = vmatprep.subr.mxu0 0.0
    %1079 = vmatpush1.msra.mxu0 0.0
    %1080 = vmatprep.subr.mxu0 0.0
    %1081 = vmatpush1.msra.mxu0 0.0
    %1082 = vmatprep.subr.mxu0 0.0
    %1083 = vmatpush1.msra.mxu0 0.0
    %1084 = vmatprep.subr.mxu0 0.0
    %1085 = vmatpush1.msra.mxu0 0.0
    %1086 = vmatprep.subr.mxu0 0.0
    %1087 = vmatpush1.msra.mxu0 0.0
    %1088 = vmatprep.subr.mxu0 0.0
    %1089 = vmatpush1.msra.mxu0 0.0
    %1090 = vmatprep.subr.mxu0 0.0
    %1091 = vmatpush1.msra.mxu0 0.0
    %1092 = vmatprep.subr.mxu0 0.0
    %1093 = vmatpush1.msra.mxu0 0.0
    %1094 = vmatprep.subr.mxu0 0.0
    %1095 = vmatpush1.msra.mxu0 0.0
    %1096 = vmatprep.subr.mxu0 0.0
    %1097 = vmatpush1.msra.mxu0 0.0
    %1098 = vmatprep.subr.mxu0 0.0
    %1099 = vmatpush1.msra.mxu0 0.0
    %1100 = vmatprep.subr.mxu0 0.0
    %1101 = vmatpush1.msra.mxu0 0.0
    %1102 = vmatprep.subr.mxu0 0.0
    %1103 = vmatpush1.msra.mxu0 0.0
    %1104 = vmatprep.subr.mxu0 0.0
    %1105 = vmatpush1.msra.mxu0 0.0
    %1106 = vmatprep.subr.mxu0 0.0
    %1107 = vmatpush1.msra.mxu0 0.0
    %1108 = vmatprep.subr.mxu0 0.0
    %1109 = vmatpush1.msra.mxu0 0.0
    %1110 = vmatprep.mubr.f32.mxu0 0.0
    %1111 = vmatmul.mubr.f32.gmra.mrb[0].mxu0 %v1035
    %v1112 = vpop.f32.mrb[0].mxu0
    %v1113 = vadd.f32 0.0, %v1112
    %v1114 = vpop.f32.mrb[0].mxu0
    %1115 = vmatprep.mubr.f32.mxu0 0.0
    %1116 = vmatmul.mubr.f32.gmra.mrb[0].mxu0 %v1038
    %v1117 = vpop.f32.mrb[0].mxu0
    %v1118 = vadd.f32 0.0, %v1117
    %v1119 = vpop.f32.mrb[0].mxu0
    %1120 = vmatprep.mubr.f32.mxu0 0.0
    %1121 = vmatmul.mubr.f32.gmra.mrb[0].mxu0 %v1041
    %v1122 = vpop.f32.mrb[0].mxu0
    %v1123 = vadd.f32 0.0, %v1122
    %v1124 = vpop.f32.mrb[0].mxu0
    %1125 = vmatprep.mubr.f32.mxu0 0.0
    %1126 = vmatmul.mubr.f32.gmra.mrb[0].mxu0 %v1044
    %v1127 = vpop.f32.mrb[0].mxu0
    %v1128 = vadd.f32 0.0, %v1127
    %v1129 = vpop.f32.mrb[0].mxu0
    %1130 = vdwg.mxu0
    %v1131 = vadd.f32 %v1025, %v1113
    %v1132 = vadd.f32 %v1026, %v1118
    %v1133 = vadd.f32 %v1027, %v1123
    %v1134 = vadd.f32 %v1028, %v1128
    %s1135 = scalar_lea.vmem [#allocation2], 192
    %v1136 = vld [vmem:[%s1135] sm:$0xff]
    %v1137 = vld [vmem:[%s1135 + $0x8] sm:$0xff]
    %v1138 = vld [vmem:[%s1135 + $0x10] sm:$0xff]
    %v1139 = vld [vmem:[%s1135 + $0x18] sm:$0xff]
    %v1141 = vsel %vm497, %v1136, 0
    %v1144 = vsel %vm497, %v1137, 0
    %v1147 = vsel %vm497, %v1138, 0
    %v1150 = vsel %vm497, %v1139, 0
    %1152 = vmatprep.subr.mxu0 0.0
    %1153 = vmatpush1.msra.mxu0 %v478
    %1154 = vmatprep.subr.mxu0 0.0
    %1155 = vmatpush1.msra.mxu0 %v481
    %1156 = vmatprep.subr.mxu0 0.0
    %1157 = vmatpush1.msra.mxu0 %v486
    %1158 = vmatprep.subr.mxu0 0.0
    %1159 = vmatpush1.msra.mxu0 %v489
    %1160 = vmatprep.subr.mxu0 0.0
    %1161 = vmatpush1.msra.mxu0 0.0
    %1162 = vmatprep.subr.mxu0 0.0
    %1163 = vmatpush1.msra.mxu0 0.0
    %1164 = vmatprep.subr.mxu0 0.0
    %1165 = vmatpush1.msra.mxu0 0.0
    %1166 = vmatprep.subr.mxu0 0.0
    %1167 = vmatpush1.msra.mxu0 0.0
    %1168 = vmatprep.subr.mxu0 0.0
    %1169 = vmatpush1.msra.mxu0 0.0
    %1170 = vmatprep.subr.mxu0 0.0
    %1171 = vmatpush1.msra.mxu0 0.0
    %1172 = vmatprep.subr.mxu0 0.0
    %1173 = vmatpush1.msra.mxu0 0.0
    %1174 = vmatprep.subr.mxu0 0.0
    %1175 = vmatpush1.msra.mxu0 0.0
    %1176 = vmatprep.subr.mxu0 0.0
    %1177 = vmatpush1.msra.mxu0 0.0
    %1178 = vmatprep.subr.mxu0 0.0
    %1179 = vmatpush1.msra.mxu0 0.0
    %1180 = vmatprep.subr.mxu0 0.0
    %1181 = vmatpush1.msra.mxu0 0.0
    %1182 = vmatprep.subr.mxu0 0.0
    %1183 = vmatpush1.msra.mxu0 0.0
    %1184 = vmatprep.subr.mxu0 0.0
    %1185 = vmatpush1.msra.mxu0 0.0
    %1186 = vmatprep.subr.mxu0 0.0
    %1187 = vmatpush1.msra.mxu0 0.0
    %1188 = vmatprep.subr.mxu0 0.0
    %1189 = vmatpush1.msra.mxu0 0.0
    %1190 = vmatprep.subr.mxu0 0.0
    %1191 = vmatpush1.msra.mxu0 0.0
    %1192 = vmatprep.subr.mxu0 0.0
    %1193 = vmatpush1.msra.mxu0 0.0
    %1194 = vmatprep.subr.mxu0 0.0
    %1195 = vmatpush1.msra.mxu0 0.0
    %1196 = vmatprep.subr.mxu0 0.0
    %1197 = vmatpush1.msra.mxu0 0.0
    %1198 = vmatprep.subr.mxu0 0.0
    %1199 = vmatpush1.msra.mxu0 0.0
    %1200 = vmatprep.subr.mxu0 0.0
    %1201 = vmatpush1.msra.mxu0 0.0
    %1202 = vmatprep.subr.mxu0 0.0
    %1203 = vmatpush1.msra.mxu0 0.0
    %1204 = vmatprep.subr.mxu0 0.0
    %1205 = vmatpush1.msra.mxu0 0.0
    %1206 = vmatprep.subr.mxu0 0.0
    %1207 = vmatpush1.msra.mxu0 0.0
    %1208 = vmatprep.subr.mxu0 0.0
    %1209 = vmatpush1.msra.mxu0 0.0
    %1210 = vmatprep.subr.mxu0 0.0
    %1211 = vmatpush1.msra.mxu0 0.0
    %1212 = vmatprep.subr.mxu0 0.0
    %1213 = vmatpush1.msra.mxu0 0.0
    %1214 = vmatprep.subr.mxu0 0.0
    %1215 = vmatpush1.msra.mxu0 0.0
    %1216 = vmatprep.mubr.f32.mxu0 0.0
    %1217 = vmatmul.mubr.f32.gmra.mrb[0].mxu0 %v1141
    %v1218 = vpop.f32.mrb[0].mxu0
    %v1219 = vadd.f32 0.0, %v1218
    %v1220 = vpop.f32.mrb[0].mxu0
    %1221 = vmatprep.mubr.f32.mxu0 0.0
    %1222 = vmatmul.mubr.f32.gmra.mrb[0].mxu0 %v1144
    %v1223 = vpop.f32.mrb[0].mxu0
    %v1224 = vadd.f32 0.0, %v1223
    %v1225 = vpop.f32.mrb[0].mxu0
    %1226 = vmatprep.mubr.f32.mxu0 0.0
    %1227 = vmatmul.mubr.f32.gmra.mrb[0].mxu0 %v1147
    %v1228 = vpop.f32.mrb[0].mxu0
    %v1229 = vadd.f32 0.0, %v1228
    %v1230 = vpop.f32.mrb[0].mxu0
    %1231 = vmatprep.mubr.f32.mxu0 0.0
    %1232 = vmatmul.mubr.f32.gmra.mrb[0].mxu0 %v1150
    %v1233 = vpop.f32.mrb[0].mxu0
    %v1234 = vadd.f32 0.0, %v1233
    %v1235 = vpop.f32.mrb[0].mxu0
    %1236 = vdwg.mxu0
    %v1237 = vadd.f32 %v1131, %v1219
    %v1238 = vadd.f32 %v1132, %v1224
    %v1239 = vadd.f32 %v1133, %v1229
    %v1240 = vadd.f32 %v1134, %v1234
    %v1241 = vmax.f32 %v1237, 0.0
    %v1242 = vmax.f32 %v1238, 0.0
    %v1243 = vmax.f32 %v1239, 0.0
    %v1244 = vmax.f32 %v1240, 0.0
    %v1245 = vpack.c.bf16 %v1242, %v1241
    %v1246 = vpack.c.bf16 %v1244, %v1243
    %v1247 = vld [vmem:[%s5] sm:$0xff]
    %v1248 = vld [vmem:[%s5 + $0x8] sm:$0xff]
    %v1249 = vld [vmem:[%s5 + $0x10] sm:$0xff]
    %v1250 = vld [vmem:[%s5 + $0x18] sm:$0xff]
    %v1251 = vld [vmem:[%s5 + $0x20] sm:$0xff]
    %v1252 = vld [vmem:[%s5 + $0x28] sm:$0xff]
    %v1253 = vld [vmem:[%s5 + $0x30] sm:$0xff]
    %v1254 = vld [vmem:[%s5 + $0x38] sm:$0xff]
    %v1255 = vld [vmem:[%s5 + $0x40] sm:$0xff]
    %v1256 = vld [vmem:[%s5 + $0x48] sm:$0xff]
    %v1257 = vld [vmem:[%s5 + $0x50] sm:$0xff]
    %v1258 = vld [vmem:[%s5 + $0x58] sm:$0xff]
    %v1259 = vld [vmem:[%s5 + $0x60] sm:$0xff]
    %v1260 = vld [vmem:[%s5 + $0x68] sm:$0xff]
    %v1261 = vld [vmem:[%s5 + $0x70] sm:$0xff]
    %v1262 = vld [vmem:[%s5 + $0x78] sm:$0xff]
    %v1263 = vld [vmem:[%s5 + $0x80] sm:$0xff]
    %v1264 = vld [vmem:[%s5 + $0x88] sm:$0xff]
    %v1265 = vld [vmem:[%s5 + $0x90] sm:$0xff]
    %v1266 = vld [vmem:[%s5 + $0x98] sm:$0xff]
    %v1267 = vld [vmem:[%s5 + $0xa0] sm:$0xff]
    %v1268 = vld [vmem:[%s5 + $0xa8] sm:$0xff]
    %v1269 = vld [vmem:[%s5 + $0xb0] sm:$0xff]
    %v1270 = vld [vmem:[%s5 + $0xb8] sm:$0xff]
    %v1271 = vld [vmem:[%s5 + $0xc0] sm:$0xff]
    %v1272 = vld [vmem:[%s5 + $0xc8] sm:$0xff]
    %v1273 = vld [vmem:[%s5 + $0xd0] sm:$0xff]
    %v1274 = vld [vmem:[%s5 + $0xd8] sm:$0xff]
    %v1275 = vld [vmem:[%s5 + $0xe0] sm:$0xff]
    %v1276 = vld [vmem:[%s5 + $0xe8] sm:$0xff]
    %v1277 = vld [vmem:[%s5 + $0xf0] sm:$0xff]
    %v1278 = vld [vmem:[%s5 + $0xf8] sm:$0xff]
    %v1311 = vunpack.c.l.b16 %v1247
    %v1312 = vunpack.c.h.b16 %v1247
    %v1313 = vunpack.c.l.b16 %v1248
    %v1314 = vunpack.c.h.b16 %v1248
    %v1315 = vunpack.c.l.b16 %v1249
    %v1316 = vunpack.c.h.b16 %v1249
    %v1317 = vunpack.c.l.b16 %v1250
    %v1318 = vunpack.c.h.b16 %v1250
    %v1319 = vunpack.c.l.b16 %v1251
    %v1320 = vunpack.c.h.b16 %v1251
    %v1321 = vunpack.c.l.b16 %v1252
    %v1322 = vunpack.c.h.b16 %v1252
    %v1323 = vunpack.c.l.b16 %v1253
    %v1324 = vunpack.c.h.b16 %v1253
    %v1325 = vunpack.c.l.b16 %v1254
    %v1326 = vunpack.c.h.b16 %v1254
    %v1327 = vunpack.c.l.b16 %v1255
    %v1328 = vunpack.c.h.b16 %v1255
    %v1329 = vunpack.c.l.b16 %v1256
    %v1330 = vunpack.c.h.b16 %v1256
    %v1331 = vunpack.c.l.b16 %v1257
    %v1332 = vunpack.c.h.b16 %v1257
    %v1333 = vunpack.c.l.b16 %v1258
    %v1334 = vunpack.c.h.b16 %v1258
    %v1335 = vunpack.c.l.b16 %v1259
    %v1336 = vunpack.c.h.b16 %v1259
    %v1337 = vunpack.c.l.b16 %v1260
    %v1338 = vunpack.c.h.b16 %v1260
    %v1339 = vunpack.c.l.b16 %v1261
    %v1340 = vunpack.c.h.b16 %v1261
    %v1341 = vunpack.c.l.b16 %v1262
    %v1342 = vunpack.c.h.b16 %v1262
    %v1343 = vunpack.c.l.b16 %v1263
    %v1344 = vunpack.c.h.b16 %v1263
    %v1345 = vunpack.c.l.b16 %v1264
    %v1346 = vunpack.c.h.b16 %v1264
    %v1347 = vunpack.c.l.b16 %v1265
    %v1348 = vunpack.c.h.b16 %v1265
    %v1349 = vunpack.c.l.b16 %v1266
    %v1350 = vunpack.c.h.b16 %v1266
    %v1351 = vunpack.c.l.b16 %v1267
    %v1352 = vunpack.c.h.b16 %v1267
    %v1353 = vunpack.c.l.b16 %v1268
    %v1354 = vunpack.c.h.b16 %v1268
    %v1355 = vunpack.c.l.b16 %v1269
    %v1356 = vunpack.c.h.b16 %v1269
    %v1357 = vunpack.c.l.b16 %v1270
    %v1358 = vunpack.c.h.b16 %v1270
    %v1359 = vunpack.c.l.b16 %v1271
    %v1360 = vunpack.c.h.b16 %v1271
    %v1361 = vunpack.c.l.b16 %v1272
    %v1362 = vunpack.c.h.b16 %v1272
    %v1363 = vunpack.c.l.b16 %v1273
    %v1364 = vunpack.c.h.b16 %v1273
    %v1365 = vunpack.c.l.b16 %v1274
    %v1366 = vunpack.c.h.b16 %v1274
    %v1367 = vunpack.c.l.b16 %v1275
    %v1368 = vunpack.c.h.b16 %v1275
    %v1369 = vunpack.c.l.b16 %v1276
    %v1370 = vunpack.c.h.b16 %v1276
    %v1371 = vunpack.c.l.b16 %v1277
    %v1372 = vunpack.c.h.b16 %v1277
    %v1373 = vunpack.c.l.b16 %v1278
    %v1374 = vunpack.c.h.b16 %v1278
    %v1375 = vpack.c.b16 %v1315, %v1311
    %v1376 = vpack.c.b16 %v1316, %v1312
    %v1377 = vpack.c.b16 %v1317, %v1313
    %v1378 = vpack.c.b16 %v1318, %v1314
    %v1379 = vpack.c.b16 %v1323, %v1319
    %v1380 = vpack.c.b16 %v1324, %v1320
    %v1381 = vpack.c.b16 %v1325, %v1321
    %v1382 = vpack.c.b16 %v1326, %v1322
    %v1383 = vpack.c.b16 %v1331, %v1327
    %v1384 = vpack.c.b16 %v1332, %v1328
    %v1385 = vpack.c.b16 %v1333, %v1329
    %v1386 = vpack.c.b16 %v1334, %v1330
    %v1387 = vpack.c.b16 %v1339, %v1335
    %v1388 = vpack.c.b16 %v1340, %v1336
    %v1389 = vpack.c.b16 %v1341, %v1337
    %v1390 = vpack.c.b16 %v1342, %v1338
    %v1391 = vpack.c.b16 %v1347, %v1343
    %v1392 = vpack.c.b16 %v1348, %v1344
    %v1393 = vpack.c.b16 %v1349, %v1345
    %v1394 = vpack.c.b16 %v1350, %v1346
    %v1395 = vpack.c.b16 %v1355, %v1351
    %v1396 = vpack.c.b16 %v1356, %v1352
    %v1397 = vpack.c.b16 %v1357, %v1353
    %v1398 = vpack.c.b16 %v1358, %v1354
    %v1399 = vpack.c.b16 %v1363, %v1359
    %v1400 = vpack.c.b16 %v1364, %v1360
    %v1401 = vpack.c.b16 %v1365, %v1361
    %v1402 = vpack.c.b16 %v1366, %v1362
    %v1403 = vpack.c.b16 %v1371, %v1367
    %v1404 = vpack.c.b16 %v1372, %v1368
    %v1405 = vpack.c.b16 %v1373, %v1369
    %v1406 = vpack.c.b16 %v1374, %v1370
    %1439 = vmatprep.subr.bf16.mxu0 %v1376
    %1440 = vmatpush1.bf16.msra.mxu0 %v1375
    %1441 = vmatprep.subr.bf16.mxu0 %v1380
    %1442 = vmatpush1.bf16.msra.mxu0 %v1379
    %1443 = vmatprep.subr.bf16.mxu0 %v1384
    %1444 = vmatpush1.bf16.msra.mxu0 %v1383
    %1445 = vmatprep.subr.bf16.mxu0 %v1388
    %1446 = vmatpush1.bf16.msra.mxu0 %v1387
    %1447 = vmatprep.subr.bf16.mxu0 %v1392
    %1448 = vmatpush1.bf16.msra.mxu0 %v1391
    %1449 = vmatprep.subr.bf16.mxu0 %v1396
    %1450 = vmatpush1.bf16.msra.mxu0 %v1395
    %1451 = vmatprep.subr.bf16.mxu0 %v1400
    %1452 = vmatpush1.bf16.msra.mxu0 %v1399
    %1453 = vmatprep.subr.bf16.mxu0 %v1404
    %1454 = vmatpush1.bf16.msra.mxu0 %v1403
    %1455 = vmatprep.subr.bf16.mxu0 0
    %1456 = vmatpush1.bf16.msra.mxu0 0
    %1457 = vmatprep.subr.bf16.mxu0 0
    %1458 = vmatpush1.bf16.msra.mxu0 0
    %1459 = vmatprep.subr.bf16.mxu0 0
    %1460 = vmatpush1.bf16.msra.mxu0 0
    %1461 = vmatprep.subr.bf16.mxu0 0
    %1462 = vmatpush1.bf16.msra.mxu0 0
    %1463 = vmatprep.subr.bf16.mxu0 0
    %1464 = vmatpush1.bf16.msra.mxu0 0
    %1465 = vmatprep.subr.bf16.mxu0 0
    %1466 = vmatpush1.bf16.msra.mxu0 0
    %1467 = vmatprep.subr.bf16.mxu0 0
    %1468 = vmatpush1.bf16.msra.mxu0 0
    %1469 = vmatprep.subr.bf16.mxu0 0
    %1470 = vmatpush1.bf16.msra.mxu0 0
    %1471 = vmatprep.mubr.bf16.mxu0 0
    %1472 = vmatmul.mubr.bf16.gmra.mrb[0].mxu0 %v1245
    %v1473 = vpop.f32.mrb[0].mxu0
    %v1474 = vadd.f32 0.0, %v1473
    %v1475 = vpop.f32.mrb[0].mxu0
    %v1476 = vadd.f32 0.0, %v1475
    %v1477 = vpop.f32.mrb[0].mxu0
    %v1478 = vadd.f32 0.0, %v1477
    %v1479 = vpop.f32.mrb[0].mxu0
    %v1480 = vadd.f32 0.0, %v1479
    %1481 = vmatprep.mubr.bf16.mxu0 0
    %1482 = vmatmul.mubr.bf16.gmra.mrb[0].mxu0 %v1246
    %v1483 = vpop.f32.mrb[0].mxu0
    %v1484 = vadd.f32 0.0, %v1483
    %v1485 = vpop.f32.mrb[0].mxu0
    %v1486 = vadd.f32 0.0, %v1485
    %v1487 = vpop.f32.mrb[0].mxu0
    %v1488 = vadd.f32 0.0, %v1487
    %v1489 = vpop.f32.mrb[0].mxu0
    %v1490 = vadd.f32 0.0, %v1489
    %1491 = vdwg.mxu0
    %1492 = vmatprep.subr.bf16.mxu0 %v1378
    %1493 = vmatpush1.bf16.msra.mxu0 %v1377
    %1494 = vmatprep.subr.bf16.mxu0 %v1382
    %1495 = vmatpush1.bf16.msra.mxu0 %v1381
    %1496 = vmatprep.subr.bf16.mxu0 %v1386
    %1497 = vmatpush1.bf16.msra.mxu0 %v1385
    %1498 = vmatprep.subr.bf16.mxu0 %v1390
    %1499 = vmatpush1.bf16.msra.mxu0 %v1389
    %1500 = vmatprep.subr.bf16.mxu0 %v1394
    %1501 = vmatpush1.bf16.msra.mxu0 %v1393
    %1502 = vmatprep.subr.bf16.mxu0 %v1398
    %1503 = vmatpush1.bf16.msra.mxu0 %v1397
    %1504 = vmatprep.subr.bf16.mxu0 %v1402
    %1505 = vmatpush1.bf16.msra.mxu0 %v1401
    %1506 = vmatprep.subr.bf16.mxu0 %v1406
    %1507 = vmatpush1.bf16.msra.mxu0 %v1405
    %1508 = vmatprep.subr.bf16.mxu0 0
    %1509 = vmatpush1.bf16.msra.mxu0 0
    %1510 = vmatprep.subr.bf16.mxu0 0
    %1511 = vmatpush1.bf16.msra.mxu0 0
    %1512 = vmatprep.subr.bf16.mxu0 0
    %1513 = vmatpush1.bf16.msra.mxu0 0
    %1514 = vmatprep.subr.bf16.mxu0 0
    %1515 = vmatpush1.bf16.msra.mxu0 0
    %1516 = vmatprep.subr.bf16.mxu0 0
    %1517 = vmatpush1.bf16.msra.mxu0 0
    %1518 = vmatprep.subr.bf16.mxu0 0
    %1519 = vmatpush1.bf16.msra.mxu0 0
    %1520 = vmatprep.subr.bf16.mxu0 0
    %1521 = vmatpush1.bf16.msra.mxu0 0
    %1522 = vmatprep.subr.bf16.mxu0 0
    %1523 = vmatpush1.bf16.msra.mxu0 0
    %1524 = vmatprep.mubr.bf16.mxu0 0
    %1525 = vmatmul.mubr.bf16.gmra.mrb[0].mxu0 %v1245
    %v1526 = vpop.f32.mrb[0].mxu0
    %v1527 = vadd.f32 0.0, %v1526
    %v1528 = vpop.f32.mrb[0].mxu0
    %v1529 = vadd.f32 0.0, %v1528
    %v1530 = vpop.f32.mrb[0].mxu0
    %v1531 = vadd.f32 0.0, %v1530
    %v1532 = vpop.f32.mrb[0].mxu0
    %v1533 = vadd.f32 0.0, %v1532
    %1534 = vmatprep.mubr.bf16.mxu0 0
    %1535 = vmatmul.mubr.bf16.gmra.mrb[0].mxu0 %v1246
    %v1536 = vpop.f32.mrb[0].mxu0
    %v1537 = vadd.f32 0.0, %v1536
    %v1538 = vpop.f32.mrb[0].mxu0
    %v1539 = vadd.f32 0.0, %v1538
    %v1540 = vpop.f32.mrb[0].mxu0
    %v1541 = vadd.f32 0.0, %v1540
    %v1542 = vpop.f32.mrb[0].mxu0
    %v1543 = vadd.f32 0.0, %v1542
    %1544 = vdwg.mxu0
    %v1545 = vld [vmem:[%s6] sm:$0x1]
    %v1546 = vld [vmem:[%s4] sm:$0xff]
    %v1547 = vld [vmem:[%s4 + $0x8] sm:$0xff]
    %v1549 = vsel %vm497, %v1546, 0
    %v1552 = vsel %vm497, %v1547, 0
    %1554 = vmatprep.subr.mxu0 0.0
    %1555 = vmatpush1.msra.mxu0 %v1474
    %1556 = vmatprep.subr.mxu0 0.0
    %1557 = vmatpush1.msra.mxu0 %v1478
    %1558 = vmatprep.subr.mxu0 0.0
    %1559 = vmatpush1.msra.mxu0 %v1484
    %1560 = vmatprep.subr.mxu0 0.0
    %1561 = vmatpush1.msra.mxu0 %v1488
    %1562 = vmatprep.subr.mxu0 0.0
    %1563 = vmatpush1.msra.mxu0 0.0
    %1564 = vmatprep.subr.mxu0 0.0
    %1565 = vmatpush1.msra.mxu0 0.0
    %1566 = vmatprep.subr.mxu0 0.0
    %1567 = vmatpush1.msra.mxu0 0.0
    %1568 = vmatprep.subr.mxu0 0.0
    %1569 = vmatpush1.msra.mxu0 0.0
    %1570 = vmatprep.subr.mxu0 0.0
    %1571 = vmatpush1.msra.mxu0 0.0
    %1572 = vmatprep.subr.mxu0 0.0
    %1573 = vmatpush1.msra.mxu0 0.0
    %1574 = vmatprep.subr.mxu0 0.0
    %1575 = vmatpush1.msra.mxu0 0.0
    %1576 = vmatprep.subr.mxu0 0.0
    %1577 = vmatpush1.msra.mxu0 0.0
    %1578 = vmatprep.subr.mxu0 0.0
    %1579 = vmatpush1.msra.mxu0 0.0
    %1580 = vmatprep.subr.mxu0 0.0
    %1581 = vmatpush1.msra.mxu0 0.0
    %1582 = vmatprep.subr.mxu0 0.0
    %1583 = vmatpush1.msra.mxu0 0.0
    %1584 = vmatprep.subr.mxu0 0.0
    %1585 = vmatpush1.msra.mxu0 0.0
    %1586 = vmatprep.subr.mxu0 0.0
    %1587 = vmatpush1.msra.mxu0 0.0
    %1588 = vmatprep.subr.mxu0 0.0
    %1589 = vmatpush1.msra.mxu0 0.0
    %1590 = vmatprep.subr.mxu0 0.0
    %1591 = vmatpush1.msra.mxu0 0.0
    %1592 = vmatprep.subr.mxu0 0.0
    %1593 = vmatpush1.msra.mxu0 0.0
    %1594 = vmatprep.subr.mxu0 0.0
    %1595 = vmatpush1.msra.mxu0 0.0
    %1596 = vmatprep.subr.mxu0 0.0
    %1597 = vmatpush1.msra.mxu0 0.0
    %1598 = vmatprep.subr.mxu0 0.0
    %1599 = vmatpush1.msra.mxu0 0.0
    %1600 = vmatprep.subr.mxu0 0.0
    %1601 = vmatpush1.msra.mxu0 0.0
    %1602 = vmatprep.subr.mxu0 0.0
    %1603 = vmatpush1.msra.mxu0 0.0
    %1604 = vmatprep.subr.mxu0 0.0
    %1605 = vmatpush1.msra.mxu0 0.0
    %1606 = vmatprep.subr.mxu0 0.0
    %1607 = vmatpush1.msra.mxu0 0.0
    %1608 = vmatprep.subr.mxu0 0.0
    %1609 = vmatpush1.msra.mxu0 0.0
    %1610 = vmatprep.subr.mxu0 0.0
    %1611 = vmatpush1.msra.mxu0 0.0
    %1612 = vmatprep.subr.mxu0 0.0
    %1613 = vmatpush1.msra.mxu0 0.0
    %1614 = vmatprep.subr.mxu0 0.0
    %1615 = vmatpush1.msra.mxu0 0.0
    %1616 = vmatprep.subr.mxu0 0.0
    %1617 = vmatpush1.msra.mxu0 0.0
    %1618 = vmatprep.mubr.f32.mxu0 0.0
    %1619 = vmatmul.mubr.f32.gmra.mrb[0].mxu0 %v1549
    %v1620 = vpop.f32.mrb[0].mxu0
    %v1621 = vadd.f32 0.0, %v1620
    %v1622 = vpop.f32.mrb[0].mxu0
    %1623 = vmatprep.mubr.f32.mxu0 0.0
    %1624 = vmatmul.mubr.f32.gmra.mrb[0].mxu0 %v1552
    %v1625 = vpop.f32.mrb[0].mxu0
    %v1626 = vadd.f32 0.0, %v1625
    %v1627 = vpop.f32.mrb[0].mxu0
    %1628 = vdwg.mxu0
    %v1630 = vlaneseq
    %v1631 = vshrl.u32 %v1630, 7
    %v1632 = vsub.s32 0, %v1631
    %v1633 = vrot.slane %v1545, %v1632
    %v1635 = vadd.f32 %v1633, %v1621
    %v1636 = vadd.f32 %v1633, %v1626
    %s1637 = scalar_lea.vmem %s4, 16
    %v1638 = vld [vmem:[%s1637] sm:$0xff]
    %v1639 = vld [vmem:[%s1637 + $0x8] sm:$0xff]
    %v1641 = vsel %vm497, %v1638, 0
    %v1644 = vsel %vm497, %v1639, 0
    %1646 = vmatprep.subr.mxu0 0.0
    %1647 = vmatpush1.msra.mxu0 %v1476
    %1648 = vmatprep.subr.mxu0 0.0
    %1649 = vmatpush1.msra.mxu0 %v1480
    %1650 = vmatprep.subr.mxu0 0.0
    %1651 = vmatpush1.msra.mxu0 %v1486
    %1652 = vmatprep.subr.mxu0 0.0
    %1653 = vmatpush1.msra.mxu0 %v1490
    %1654 = vmatprep.subr.mxu0 0.0
    %1655 = vmatpush1.msra.mxu0 0.0
    %1656 = vmatprep.subr.mxu0 0.0
    %1657 = vmatpush1.msra.mxu0 0.0
    %1658 = vmatprep.subr.mxu0 0.0
    %1659 = vmatpush1.msra.mxu0 0.0
    %1660 = vmatprep.subr.mxu0 0.0
    %1661 = vmatpush1.msra.mxu0 0.0
    %1662 = vmatprep.subr.mxu0 0.0
    %1663 = vmatpush1.msra.mxu0 0.0
    %1664 = vmatprep.subr.mxu0 0.0
    %1665 = vmatpush1.msra.mxu0 0.0
    %1666 = vmatprep.subr.mxu0 0.0
    %1667 = vmatpush1.msra.mxu0 0.0
    %1668 = vmatprep.subr.mxu0 0.0
    %1669 = vmatpush1.msra.mxu0 0.0
    %1670 = vmatprep.subr.mxu0 0.0
    %1671 = vmatpush1.msra.mxu0 0.0
    %1672 = vmatprep.subr.mxu0 0.0
    %1673 = vmatpush1.msra.mxu0 0.0
    %1674 = vmatprep.subr.mxu0 0.0
    %1675 = vmatpush1.msra.mxu0 0.0
    %1676 = vmatprep.subr.mxu0 0.0
    %1677 = vmatpush1.msra.mxu0 0.0
    %1678 = vmatprep.subr.mxu0 0.0
    %1679 = vmatpush1.msra.mxu0 0.0
    %1680 = vmatprep.subr.mxu0 0.0
    %1681 = vmatpush1.msra.mxu0 0.0
    %1682 = vmatprep.subr.mxu0 0.0
    %1683 = vmatpush1.msra.mxu0 0.0
    %1684 = vmatprep.subr.mxu0 0.0
    %1685 = vmatpush1.msra.mxu0 0.0
    %1686 = vmatprep.subr.mxu0 0.0
    %1687 = vmatpush1.msra.mxu0 0.0
    %1688 = vmatprep.subr.mxu0 0.0
    %1689 = vmatpush1.msra.mxu0 0.0
    %1690 = vmatprep.subr.mxu0 0.0
    %1691 = vmatpush1.msra.mxu0 0.0
    %1692 = vmatprep.subr.mxu0 0.0
    %1693 = vmatpush1.msra.mxu0 0.0
    %1694 = vmatprep.subr.mxu0 0.0
    %1695 = vmatpush1.msra.mxu0 0.0
    %1696 = vmatprep.subr.mxu0 0.0
    %1697 = vmatpush1.msra.mxu0 0.0
    %1698 = vmatprep.subr.mxu0 0.0
    %1699 = vmatpush1.msra.mxu0 0.0
    %1700 = vmatprep.subr.mxu0 0.0
    %1701 = vmatpush1.msra.mxu0 0.0
    %1702 = vmatprep.subr.mxu0 0.0
    %1703 = vmatpush1.msra.mxu0 0.0
    %1704 = vmatprep.subr.mxu0 0.0
    %1705 = vmatpush1.msra.mxu0 0.0
    %1706 = vmatprep.subr.mxu0 0.0
    %1707 = vmatpush1.msra.mxu0 0.0
    %1708 = vmatprep.subr.mxu0 0.0
    %1709 = vmatpush1.msra.mxu0 0.0
    %1710 = vmatprep.mubr.f32.mxu0 0.0
    %1711 = vmatmul.mubr.f32.gmra.mrb[0].mxu0 %v1641
    %v1712 = vpop.f32.mrb[0].mxu0
    %v1713 = vadd.f32 0.0, %v1712
    %v1714 = vpop.f32.mrb[0].mxu0
    %1715 = vmatprep.mubr.f32.mxu0 0.0
    %1716 = vmatmul.mubr.f32.gmra.mrb[0].mxu0 %v1644
    %v1717 = vpop.f32.mrb[0].mxu0
    %v1718 = vadd.f32 0.0, %v1717
    %v1719 = vpop.f32.mrb[0].mxu0
    %1720 = vdwg.mxu0
    %v1721 = vadd.f32 %v1635, %v1713
    %v1722 = vadd.f32 %v1636, %v1718
    %s1723 = scalar_lea.vmem %s4, 32
    %v1724 = vld [vmem:[%s1723] sm:$0xff]
    %v1725 = vld [vmem:[%s1723 + $0x8] sm:$0xff]
    %v1727 = vsel %vm497, %v1724, 0
    %v1730 = vsel %vm497, %v1725, 0
    %1732 = vmatprep.subr.mxu0 0.0
    %1733 = vmatpush1.msra.mxu0 %v1527
    %1734 = vmatprep.subr.mxu0 0.0
    %1735 = vmatpush1.msra.mxu0 %v1531
    %1736 = vmatprep.subr.mxu0 0.0
    %1737 = vmatpush1.msra.mxu0 %v1537
    %1738 = vmatprep.subr.mxu0 0.0
    %1739 = vmatpush1.msra.mxu0 %v1541
    %1740 = vmatprep.subr.mxu0 0.0
    %1741 = vmatpush1.msra.mxu0 0.0
    %1742 = vmatprep.subr.mxu0 0.0
    %1743 = vmatpush1.msra.mxu0 0.0
    %1744 = vmatprep.subr.mxu0 0.0
    %1745 = vmatpush1.msra.mxu0 0.0
    %1746 = vmatprep.subr.mxu0 0.0
    %1747 = vmatpush1.msra.mxu0 0.0
    %1748 = vmatprep.subr.mxu0 0.0
    %1749 = vmatpush1.msra.mxu0 0.0
    %1750 = vmatprep.subr.mxu0 0.0
    %1751 = vmatpush1.msra.mxu0 0.0
    %1752 = vmatprep.subr.mxu0 0.0
    %1753 = vmatpush1.msra.mxu0 0.0
    %1754 = vmatprep.subr.mxu0 0.0
    %1755 = vmatpush1.msra.mxu0 0.0
    %1756 = vmatprep.subr.mxu0 0.0
    %1757 = vmatpush1.msra.mxu0 0.0
    %1758 = vmatprep.subr.mxu0 0.0
    %1759 = vmatpush1.msra.mxu0 0.0
    %1760 = vmatprep.subr.mxu0 0.0
    %1761 = vmatpush1.msra.mxu0 0.0
    %1762 = vmatprep.subr.mxu0 0.0
    %1763 = vmatpush1.msra.mxu0 0.0
    %1764 = vmatprep.subr.mxu0 0.0
    %1765 = vmatpush1.msra.mxu0 0.0
    %1766 = vmatprep.subr.mxu0 0.0
    %1767 = vmatpush1.msra.mxu0 0.0
    %1768 = vmatprep.subr.mxu0 0.0
    %1769 = vmatpush1.msra.mxu0 0.0
    %1770 = vmatprep.subr.mxu0 0.0
    %1771 = vmatpush1.msra.mxu0 0.0
    %1772 = vmatprep.subr.mxu0 0.0
    %1773 = vmatpush1.msra.mxu0 0.0
    %1774 = vmatprep.subr.mxu0 0.0
    %1775 = vmatpush1.msra.mxu0 0.0
    %1776 = vmatprep.subr.mxu0 0.0
    %1777 = vmatpush1.msra.mxu0 0.0
    %1778 = vmatprep.subr.mxu0 0.0
    %1779 = vmatpush1.msra.mxu0 0.0
    %1780 = vmatprep.subr.mxu0 0.0
    %1781 = vmatpush1.msra.mxu0 0.0
    %1782 = vmatprep.subr.mxu0 0.0
    %1783 = vmatpush1.msra.mxu0 0.0
    %1784 = vmatprep.subr.mxu0 0.0
    %1785 = vmatpush1.msra.mxu0 0.0
    %1786 = vmatprep.subr.mxu0 0.0
    %1787 = vmatpush1.msra.mxu0 0.0
    %1788 = vmatprep.subr.mxu0 0.0
    %1789 = vmatpush1.msra.mxu0 0.0
    %1790 = vmatprep.subr.mxu0 0.0
    %1791 = vmatpush1.msra.mxu0 0.0
    %1792 = vmatprep.subr.mxu0 0.0
    %1793 = vmatpush1.msra.mxu0 0.0
    %1794 = vmatprep.subr.mxu0 0.0
    %1795 = vmatpush1.msra.mxu0 0.0
    %1796 = vmatprep.mubr.f32.mxu0 0.0
    %1797 = vmatmul.mubr.f32.gmra.mrb[0].mxu0 %v1727
    %v1798 = vpop.f32.mrb[0].mxu0
    %v1799 = vadd.f32 0.0, %v1798
    %v1800 = vpop.f32.mrb[0].mxu0
    %1801 = vmatprep.mubr.f32.mxu0 0.0
    %1802 = vmatmul.mubr.f32.gmra.mrb[0].mxu0 %v1730
    %v1803 = vpop.f32.mrb[0].mxu0
    %v1804 = vadd.f32 0.0, %v1803
    %v1805 = vpop.f32.mrb[0].mxu0
    %1806 = vdwg.mxu0
    %v1807 = vadd.f32 %v1721, %v1799
    %v1808 = vadd.f32 %v1722, %v1804
    %s1809 = scalar_lea.vmem %s4, 48
    %v1810 = vld [vmem:[%s1809] sm:$0xff]
    %v1811 = vld [vmem:[%s1809 + $0x8] sm:$0xff]
    %v1813 = vsel %vm497, %v1810, 0
    %v1816 = vsel %vm497, %v1811, 0
    %1818 = vmatprep.subr.mxu0 0.0
    %1819 = vmatpush1.msra.mxu0 %v1529
    %1820 = vmatprep.subr.mxu0 0.0
    %1821 = vmatpush1.msra.mxu0 %v1533
    %1822 = vmatprep.subr.mxu0 0.0
    %1823 = vmatpush1.msra.mxu0 %v1539
    %1824 = vmatprep.subr.mxu0 0.0
    %1825 = vmatpush1.msra.mxu0 %v1543
    %1826 = vmatprep.subr.mxu0 0.0
    %1827 = vmatpush1.msra.mxu0 0.0
    %1828 = vmatprep.subr.mxu0 0.0
    %1829 = vmatpush1.msra.mxu0 0.0
    %1830 = vmatprep.subr.mxu0 0.0
    %1831 = vmatpush1.msra.mxu0 0.0
    %1832 = vmatprep.subr.mxu0 0.0
    %1833 = vmatpush1.msra.mxu0 0.0
    %1834 = vmatprep.subr.mxu0 0.0
    %1835 = vmatpush1.msra.mxu0 0.0
    %1836 = vmatprep.subr.mxu0 0.0
    %1837 = vmatpush1.msra.mxu0 0.0
    %1838 = vmatprep.subr.mxu0 0.0
    %1839 = vmatpush1.msra.mxu0 0.0
    %1840 = vmatprep.subr.mxu0 0.0
    %1841 = vmatpush1.msra.mxu0 0.0
    %1842 = vmatprep.subr.mxu0 0.0
    %1843 = vmatpush1.msra.mxu0 0.0
    %1844 = vmatprep.subr.mxu0 0.0
    %1845 = vmatpush1.msra.mxu0 0.0
    %1846 = vmatprep.subr.mxu0 0.0
    %1847 = vmatpush1.msra.mxu0 0.0
    %1848 = vmatprep.subr.mxu0 0.0
    %1849 = vmatpush1.msra.mxu0 0.0
    %1850 = vmatprep.subr.mxu0 0.0
    %1851 = vmatpush1.msra.mxu0 0.0
    %1852 = vmatprep.subr.mxu0 0.0
    %1853 = vmatpush1.msra.mxu0 0.0
    %1854 = vmatprep.subr.mxu0 0.0
    %1855 = vmatpush1.msra.mxu0 0.0
    %1856 = vmatprep.subr.mxu0 0.0
    %1857 = vmatpush1.msra.mxu0 0.0
    %1858 = vmatprep.subr.mxu0 0.0
    %1859 = vmatpush1.msra.mxu0 0.0
    %1860 = vmatprep.subr.mxu0 0.0
    %1861 = vmatpush1.msra.mxu0 0.0
    %1862 = vmatprep.subr.mxu0 0.0
    %1863 = vmatpush1.msra.mxu0 0.0
    %1864 = vmatprep.subr.mxu0 0.0
    %1865 = vmatpush1.msra.mxu0 0.0
    %1866 = vmatprep.subr.mxu0 0.0
    %1867 = vmatpush1.msra.mxu0 0.0
    %1868 = vmatprep.subr.mxu0 0.0
    %1869 = vmatpush1.msra.mxu0 0.0
    %1870 = vmatprep.subr.mxu0 0.0
    %1871 = vmatpush1.msra.mxu0 0.0
    %1872 = vmatprep.subr.mxu0 0.0
    %1873 = vmatpush1.msra.mxu0 0.0
    %1874 = vmatprep.subr.mxu0 0.0
    %1875 = vmatpush1.msra.mxu0 0.0
    %1876 = vmatprep.subr.mxu0 0.0
    %1877 = vmatpush1.msra.mxu0 0.0
    %1878 = vmatprep.subr.mxu0 0.0
    %1879 = vmatpush1.msra.mxu0 0.0
    %1880 = vmatprep.subr.mxu0 0.0
    %1881 = vmatpush1.msra.mxu0 0.0
    %1882 = vmatprep.mubr.f32.mxu0 0.0
    %1883 = vmatmul.mubr.f32.gmra.mrb[0].mxu0 %v1813
    %v1884 = vpop.f32.mrb[0].mxu0
    %v1885 = vadd.f32 0.0, %v1884
    %v1886 = vpop.f32.mrb[0].mxu0
    %1887 = vmatprep.mubr.f32.mxu0 0.0
    %1888 = vmatmul.mubr.f32.gmra.mrb[0].mxu0 %v1816
    %v1889 = vpop.f32.mrb[0].mxu0
    %v1890 = vadd.f32 0.0, %v1889
    %v1891 = vpop.f32.mrb[0].mxu0
    %1892 = vdwg.mxu0
    %v1893 = vadd.f32 %v1807, %v1885
    %v1894 = vadd.f32 %v1808, %v1890
    %v1895 = vmax.f32 %v1893, 0.0
    %v1896 = vmax.f32 %v1894, 0.0
    %v1897 = vpack.c.bf16 %v1896, %v1895
    %v1898 = vld [vmem:[#allocation7] sm:$0xff]
    %v1899 = vld [vmem:[#allocation7 + $0x8] sm:$0xff]
    %v1900 = vld [vmem:[#allocation7 + $0x10] sm:$0xff]
    %v1901 = vld [vmem:[#allocation7 + $0x18] sm:$0xff]
    %v1902 = vld [vmem:[#allocation7 + $0x20] sm:$0xff]
    %v1903 = vld [vmem:[#allocation7 + $0x28] sm:$0xff]
    %v1904 = vld [vmem:[#allocation7 + $0x30] sm:$0xff]
    %v1905 = vld [vmem:[#allocation7 + $0x38] sm:$0xff]
    %v1906 = vld [vmem:[#allocation7 + $0x40] sm:$0xff]
    %v1907 = vld [vmem:[#allocation7 + $0x48] sm:$0xff]
    %v1908 = vld [vmem:[#allocation7 + $0x50] sm:$0xff]
    %v1909 = vld [vmem:[#allocation7 + $0x58] sm:$0xff]
    %v1910 = vld [vmem:[#allocation7 + $0x60] sm:$0xff]
    %v1911 = vld [vmem:[#allocation7 + $0x68] sm:$0xff]
    %v1912 = vld [vmem:[#allocation7 + $0x70] sm:$0xff]
    %v1913 = vld [vmem:[#allocation7 + $0x78] sm:$0xff]
    %v1914 = vld [vmem:[#allocation7 + $0x80] sm:$0xff]
    %v1915 = vld [vmem:[#allocation7 + $0x88] sm:$0xff]
    %v1916 = vld [vmem:[#allocation7 + $0x90] sm:$0xff]
    %v1917 = vld [vmem:[#allocation7 + $0x98] sm:$0xff]
    %v1918 = vld [vmem:[#allocation7 + $0xa0] sm:$0xff]
    %v1919 = vld [vmem:[#allocation7 + $0xa8] sm:$0xff]
    %v1920 = vld [vmem:[#allocation7 + $0xb0] sm:$0xff]
    %v1921 = vld [vmem:[#allocation7 + $0xb8] sm:$0xff]
    %v1922 = vld [vmem:[#allocation7 + $0xc0] sm:$0xff]
    %v1923 = vld [vmem:[#allocation7 + $0xc8] sm:$0xff]
    %v1924 = vld [vmem:[#allocation7 + $0xd0] sm:$0xff]
    %v1925 = vld [vmem:[#allocation7 + $0xd8] sm:$0xff]
    %v1926 = vld [vmem:[#allocation7 + $0xe0] sm:$0xff]
    %v1927 = vld [vmem:[#allocation7 + $0xe8] sm:$0xff]
    %v1928 = vld [vmem:[#allocation7 + $0xf0] sm:$0xff]
    %v1929 = vld [vmem:[#allocation7 + $0xf8] sm:$0xff]
    %v1962 = vunpack.c.l.b16 %v1898
    %v1963 = vunpack.c.h.b16 %v1898
    %v1964 = vunpack.c.l.b16 %v1899
    %v1965 = vunpack.c.h.b16 %v1899
    %v1966 = vunpack.c.l.b16 %v1900
    %v1967 = vunpack.c.h.b16 %v1900
    %v1968 = vunpack.c.l.b16 %v1901
    %v1969 = vunpack.c.h.b16 %v1901
    %v1970 = vunpack.c.l.b16 %v1902
    %v1971 = vunpack.c.h.b16 %v1902
    %v1972 = vunpack.c.l.b16 %v1903
    %v1973 = vunpack.c.h.b16 %v1903
    %v1974 = vunpack.c.l.b16 %v1904
    %v1975 = vunpack.c.h.b16 %v1904
    %v1976 = vunpack.c.l.b16 %v1905
    %v1977 = vunpack.c.h.b16 %v1905
    %v1978 = vunpack.c.l.b16 %v1906
    %v1979 = vunpack.c.h.b16 %v1906
    %v1980 = vunpack.c.l.b16 %v1907
    %v1981 = vunpack.c.h.b16 %v1907
    %v1982 = vunpack.c.l.b16 %v1908
    %v1983 = vunpack.c.h.b16 %v1908
    %v1984 = vunpack.c.l.b16 %v1909
    %v1985 = vunpack.c.h.b16 %v1909
    %v1986 = vunpack.c.l.b16 %v1910
    %v1987 = vunpack.c.h.b16 %v1910
    %v1988 = vunpack.c.l.b16 %v1911
    %v1989 = vunpack.c.h.b16 %v1911
    %v1990 = vunpack.c.l.b16 %v1912
    %v1991 = vunpack.c.h.b16 %v1912
    %v1992 = vunpack.c.l.b16 %v1913
    %v1993 = vunpack.c.h.b16 %v1913
    %v1994 = vunpack.c.l.b16 %v1914
    %v1995 = vunpack.c.h.b16 %v1914
    %v1996 = vunpack.c.l.b16 %v1915
    %v1997 = vunpack.c.h.b16 %v1915
    %v1998 = vunpack.c.l.b16 %v1916
    %v1999 = vunpack.c.h.b16 %v1916
    %v2000 = vunpack.c.l.b16 %v1917
    %v2001 = vunpack.c.h.b16 %v1917
    %v2002 = vunpack.c.l.b16 %v1918
    %v2003 = vunpack.c.h.b16 %v1918
    %v2004 = vunpack.c.l.b16 %v1919
    %v2005 = vunpack.c.h.b16 %v1919
    %v2006 = vunpack.c.l.b16 %v1920
    %v2007 = vunpack.c.h.b16 %v1920
    %v2008 = vunpack.c.l.b16 %v1921
    %v2009 = vunpack.c.h.b16 %v1921
    %v2010 = vunpack.c.l.b16 %v1922
    %v2011 = vunpack.c.h.b16 %v1922
    %v2012 = vunpack.c.l.b16 %v1923
    %v2013 = vunpack.c.h.b16 %v1923
    %v2014 = vunpack.c.l.b16 %v1924
    %v2015 = vunpack.c.h.b16 %v1924
    %v2016 = vunpack.c.l.b16 %v1925
    %v2017 = vunpack.c.h.b16 %v1925
    %v2018 = vunpack.c.l.b16 %v1926
    %v2019 = vunpack.c.h.b16 %v1926
    %v2020 = vunpack.c.l.b16 %v1927
    %v2021 = vunpack.c.h.b16 %v1927
    %v2022 = vunpack.c.l.b16 %v1928
    %v2023 = vunpack.c.h.b16 %v1928
    %v2024 = vunpack.c.l.b16 %v1929
    %v2025 = vunpack.c.h.b16 %v1929
    %v2026 = vpack.c.b16 %v1966, %v1962
    %v2027 = vpack.c.b16 %v1967, %v1963
    %v2028 = vpack.c.b16 %v1968, %v1964
    %v2029 = vpack.c.b16 %v1969, %v1965
    %v2030 = vpack.c.b16 %v1974, %v1970
    %v2031 = vpack.c.b16 %v1975, %v1971
    %v2032 = vpack.c.b16 %v1976, %v1972
    %v2033 = vpack.c.b16 %v1977, %v1973
    %v2034 = vpack.c.b16 %v1982, %v1978
    %v2035 = vpack.c.b16 %v1983, %v1979
    %v2036 = vpack.c.b16 %v1984, %v1980
    %v2037 = vpack.c.b16 %v1985, %v1981
    %v2038 = vpack.c.b16 %v1990, %v1986
    %v2039 = vpack.c.b16 %v1991, %v1987
    %v2040 = vpack.c.b16 %v1992, %v1988
    %v2041 = vpack.c.b16 %v1993, %v1989
    %v2042 = vpack.c.b16 %v1998, %v1994
    %v2043 = vpack.c.b16 %v1999, %v1995
    %v2044 = vpack.c.b16 %v2000, %v1996
    %v2045 = vpack.c.b16 %v2001, %v1997
    %v2046 = vpack.c.b16 %v2006, %v2002
    %v2047 = vpack.c.b16 %v2007, %v2003
    %v2048 = vpack.c.b16 %v2008, %v2004
    %v2049 = vpack.c.b16 %v2009, %v2005
    %v2050 = vpack.c.b16 %v2014, %v2010
    %v2051 = vpack.c.b16 %v2015, %v2011
    %v2052 = vpack.c.b16 %v2016, %v2012
    %v2053 = vpack.c.b16 %v2017, %v2013
    %v2054 = vpack.c.b16 %v2022, %v2018
    %v2055 = vpack.c.b16 %v2023, %v2019
    %v2056 = vpack.c.b16 %v2024, %v2020
    %v2057 = vpack.c.b16 %v2025, %v2021
    %2090 = vmatprep.subr.bf16.mxu0 %v2027
    %2091 = vmatpush1.bf16.msra.mxu0 %v2026
    %2092 = vmatprep.subr.bf16.mxu0 %v2031
    %2093 = vmatpush1.bf16.msra.mxu0 %v2030
    %2094 = vmatprep.subr.bf16.mxu0 %v2035
    %2095 = vmatpush1.bf16.msra.mxu0 %v2034
    %2096 = vmatprep.subr.bf16.mxu0 %v2039
    %2097 = vmatpush1.bf16.msra.mxu0 %v2038
    %2098 = vmatprep.subr.bf16.mxu0 %v2043
    %2099 = vmatpush1.bf16.msra.mxu0 %v2042
    %2100 = vmatprep.subr.bf16.mxu0 %v2047
    %2101 = vmatpush1.bf16.msra.mxu0 %v2046
    %2102 = vmatprep.subr.bf16.mxu0 %v2051
    %2103 = vmatpush1.bf16.msra.mxu0 %v2050
    %2104 = vmatprep.subr.bf16.mxu0 %v2055
    %2105 = vmatpush1.bf16.msra.mxu0 %v2054
    %2106 = vmatprep.subr.bf16.mxu0 0
    %2107 = vmatpush1.bf16.msra.mxu0 0
    %2108 = vmatprep.subr.bf16.mxu0 0
    %2109 = vmatpush1.bf16.msra.mxu0 0
    %2110 = vmatprep.subr.bf16.mxu0 0
    %2111 = vmatpush1.bf16.msra.mxu0 0
    %2112 = vmatprep.subr.bf16.mxu0 0
    %2113 = vmatpush1.bf16.msra.mxu0 0
    %2114 = vmatprep.subr.bf16.mxu0 0
    %2115 = vmatpush1.bf16.msra.mxu0 0
    %2116 = vmatprep.subr.bf16.mxu0 0
    %2117 = vmatpush1.bf16.msra.mxu0 0
    %2118 = vmatprep.subr.bf16.mxu0 0
    %2119 = vmatpush1.bf16.msra.mxu0 0
    %2120 = vmatprep.subr.bf16.mxu0 0
    %2121 = vmatpush1.bf16.msra.mxu0 0
    %2122 = vmatprep.mubr.bf16.mxu0 0
    %2123 = vmatmul.mubr.bf16.gmra.mrb[0].mxu0 %v1897
    %v2124 = vpop.f32.mrb[0].mxu0
    %v2125 = vadd.f32 0.0, %v2124
    %v2126 = vpop.f32.mrb[0].mxu0
    %v2127 = vadd.f32 0.0, %v2126
    %v2128 = vpop.f32.mrb[0].mxu0
    %v2129 = vadd.f32 0.0, %v2128
    %v2130 = vpop.f32.mrb[0].mxu0
    %v2131 = vadd.f32 0.0, %v2130
    %2132 = vdwg.mxu0
    %2133 = vmatprep.subr.bf16.mxu0 %v2029
    %2134 = vmatpush1.bf16.msra.mxu0 %v2028
    %2135 = vmatprep.subr.bf16.mxu0 %v2033
    %2136 = vmatpush1.bf16.msra.mxu0 %v2032
    %2137 = vmatprep.subr.bf16.mxu0 %v2037
    %2138 = vmatpush1.bf16.msra.mxu0 %v2036
    %2139 = vmatprep.subr.bf16.mxu0 %v2041
    %2140 = vmatpush1.bf16.msra.mxu0 %v2040
    %2141 = vmatprep.subr.bf16.mxu0 %v2045
    %2142 = vmatpush1.bf16.msra.mxu0 %v2044
    %2143 = vmatprep.subr.bf16.mxu0 %v2049
    %2144 = vmatpush1.bf16.msra.mxu0 %v2048
    %2145 = vmatprep.subr.bf16.mxu0 %v2053
    %2146 = vmatpush1.bf16.msra.mxu0 %v2052
    %2147 = vmatprep.subr.bf16.mxu0 %v2057
    %2148 = vmatpush1.bf16.msra.mxu0 %v2056
    %2149 = vmatprep.subr.bf16.mxu0 0
    %2150 = vmatpush1.bf16.msra.mxu0 0
    %2151 = vmatprep.subr.bf16.mxu0 0
    %2152 = vmatpush1.bf16.msra.mxu0 0
    %2153 = vmatprep.subr.bf16.mxu0 0
    %2154 = vmatpush1.bf16.msra.mxu0 0
    %2155 = vmatprep.subr.bf16.mxu0 0
    %2156 = vmatpush1.bf16.msra.mxu0 0
    %2157 = vmatprep.subr.bf16.mxu0 0
    %2158 = vmatpush1.bf16.msra.mxu0 0
    %2159 = vmatprep.subr.bf16.mxu0 0
    %2160 = vmatpush1.bf16.msra.mxu0 0
    %2161 = vmatprep.subr.bf16.mxu0 0
    %2162 = vmatpush1.bf16.msra.mxu0 0
    %2163 = vmatprep.subr.bf16.mxu0 0
    %2164 = vmatpush1.bf16.msra.mxu0 0
    %2165 = vmatprep.mubr.bf16.mxu0 0
    %2166 = vmatmul.mubr.bf16.gmra.mrb[0].mxu0 %v1897
    %v2167 = vpop.f32.mrb[0].mxu0
    %v2168 = vadd.f32 0.0, %v2167
    %v2169 = vpop.f32.mrb[0].mxu0
    %v2170 = vadd.f32 0.0, %v2169
    %v2171 = vpop.f32.mrb[0].mxu0
    %v2172 = vadd.f32 0.0, %v2171
    %v2173 = vpop.f32.mrb[0].mxu0
    %v2174 = vadd.f32 0.0, %v2173
    %2175 = vdwg.mxu0
    %v2176 = vld [vmem:[%s9] sm:$0x1]
    %v2177 = vld [vmem:[%s7] sm:$0xff]
    %vm2178 = vcmask 130048
    %v2180 = vsel %vm2178, %v2177, 0
    %2182 = vmatprep.subr.mxu0 0.0
    %2183 = vmatpush1.msra.mxu0 %v2125
    %2184 = vmatprep.subr.mxu0 0.0
    %2185 = vmatpush1.msra.mxu0 %v2129
    %2186 = vmatprep.subr.mxu0 0.0
    %2187 = vmatpush1.msra.mxu0 0.0
    %2188 = vmatprep.subr.mxu0 0.0
    %2189 = vmatpush1.msra.mxu0 0.0
    %2190 = vmatprep.subr.mxu0 0.0
    %2191 = vmatpush1.msra.mxu0 0.0
    %2192 = vmatprep.subr.mxu0 0.0
    %2193 = vmatpush1.msra.mxu0 0.0
    %2194 = vmatprep.subr.mxu0 0.0
    %2195 = vmatpush1.msra.mxu0 0.0
    %2196 = vmatprep.subr.mxu0 0.0
    %2197 = vmatpush1.msra.mxu0 0.0
    %2198 = vmatprep.subr.mxu0 0.0
    %2199 = vmatpush1.msra.mxu0 0.0
    %2200 = vmatprep.subr.mxu0 0.0
    %2201 = vmatpush1.msra.mxu0 0.0
    %2202 = vmatprep.subr.mxu0 0.0
    %2203 = vmatpush1.msra.mxu0 0.0
    %2204 = vmatprep.subr.mxu0 0.0
    %2205 = vmatpush1.msra.mxu0 0.0
    %2206 = vmatprep.subr.mxu0 0.0
    %2207 = vmatpush1.msra.mxu0 0.0
    %2208 = vmatprep.subr.mxu0 0.0
    %2209 = vmatpush1.msra.mxu0 0.0
    %2210 = vmatprep.subr.mxu0 0.0
    %2211 = vmatpush1.msra.mxu0 0.0
    %2212 = vmatprep.subr.mxu0 0.0
    %2213 = vmatpush1.msra.mxu0 0.0
    %2214 = vmatprep.subr.mxu0 0.0
    %2215 = vmatpush1.msra.mxu0 0.0
    %2216 = vmatprep.subr.mxu0 0.0
    %2217 = vmatpush1.msra.mxu0 0.0
    %2218 = vmatprep.subr.mxu0 0.0
    %2219 = vmatpush1.msra.mxu0 0.0
    %2220 = vmatprep.subr.mxu0 0.0
    %2221 = vmatpush1.msra.mxu0 0.0
    %2222 = vmatprep.subr.mxu0 0.0
    %2223 = vmatpush1.msra.mxu0 0.0
    %2224 = vmatprep.subr.mxu0 0.0
    %2225 = vmatpush1.msra.mxu0 0.0
    %2226 = vmatprep.subr.mxu0 0.0
    %2227 = vmatpush1.msra.mxu0 0.0
    %2228 = vmatprep.subr.mxu0 0.0
    %2229 = vmatpush1.msra.mxu0 0.0
    %2230 = vmatprep.subr.mxu0 0.0
    %2231 = vmatpush1.msra.mxu0 0.0
    %2232 = vmatprep.subr.mxu0 0.0
    %2233 = vmatpush1.msra.mxu0 0.0
    %2234 = vmatprep.subr.mxu0 0.0
    %2235 = vmatpush1.msra.mxu0 0.0
    %2236 = vmatprep.subr.mxu0 0.0
    %2237 = vmatpush1.msra.mxu0 0.0
    %2238 = vmatprep.subr.mxu0 0.0
    %2239 = vmatpush1.msra.mxu0 0.0
    %2240 = vmatprep.subr.mxu0 0.0
    %2241 = vmatpush1.msra.mxu0 0.0
    %2242 = vmatprep.subr.mxu0 0.0
    %2243 = vmatpush1.msra.mxu0 0.0
    %2244 = vmatprep.subr.mxu0 0.0
    %2245 = vmatpush1.msra.mxu0 0.0
    %2246 = vmatprep.mubr.f32.mxu0 0.0
    %2247 = vmatmul.mubr.f32.gmra.mrb[0].mxu0 %v2180
    %v2248 = vpop.f32.mrb[0].mxu0
    %v2249 = vadd.f32 0.0, %v2248
    %v2250 = vpop.f32.mrb[0].mxu0
    %2251 = vdwg.mxu0
    %v2253 = vlaneseq
    %v2254 = vshrl.u32 %v2253, 7
    %v2255 = vsub.s32 0, %v2254
    %v2256 = vrot.slane %v2176, %v2255
    %v2258 = vadd.f32 %v2256, %v2249
    %s2259 = scalar_lea.vmem %s7, 8
    %v2260 = vld [vmem:[%s2259] sm:$0xff]
    %v2262 = vsel %vm2178, %v2260, 0
    %2264 = vmatprep.subr.mxu0 0.0
    %2265 = vmatpush1.msra.mxu0 %v2127
    %2266 = vmatprep.subr.mxu0 0.0
    %2267 = vmatpush1.msra.mxu0 %v2131
    %2268 = vmatprep.subr.mxu0 0.0
    %2269 = vmatpush1.msra.mxu0 0.0
    %2270 = vmatprep.subr.mxu0 0.0
    %2271 = vmatpush1.msra.mxu0 0.0
    %2272 = vmatprep.subr.mxu0 0.0
    %2273 = vmatpush1.msra.mxu0 0.0
    %2274 = vmatprep.subr.mxu0 0.0
    %2275 = vmatpush1.msra.mxu0 0.0
    %2276 = vmatprep.subr.mxu0 0.0
    %2277 = vmatpush1.msra.mxu0 0.0
    %2278 = vmatprep.subr.mxu0 0.0
    %2279 = vmatpush1.msra.mxu0 0.0
    %2280 = vmatprep.subr.mxu0 0.0
    %2281 = vmatpush1.msra.mxu0 0.0
    %2282 = vmatprep.subr.mxu0 0.0
    %2283 = vmatpush1.msra.mxu0 0.0
    %2284 = vmatprep.subr.mxu0 0.0
    %2285 = vmatpush1.msra.mxu0 0.0
    %2286 = vmatprep.subr.mxu0 0.0
    %2287 = vmatpush1.msra.mxu0 0.0
    %2288 = vmatprep.subr.mxu0 0.0
    %2289 = vmatpush1.msra.mxu0 0.0
    %2290 = vmatprep.subr.mxu0 0.0
    %2291 = vmatpush1.msra.mxu0 0.0
    %2292 = vmatprep.subr.mxu0 0.0
    %2293 = vmatpush1.msra.mxu0 0.0
    %2294 = vmatprep.subr.mxu0 0.0
    %2295 = vmatpush1.msra.mxu0 0.0
    %2296 = vmatprep.subr.mxu0 0.0
    %2297 = vmatpush1.msra.mxu0 0.0
    %2298 = vmatprep.subr.mxu0 0.0
    %2299 = vmatpush1.msra.mxu0 0.0
    %2300 = vmatprep.subr.mxu0 0.0
    %2301 = vmatpush1.msra.mxu0 0.0
    %2302 = vmatprep.subr.mxu0 0.0
    %2303 = vmatpush1.msra.mxu0 0.0
    %2304 = vmatprep.subr.mxu0 0.0
    %2305 = vmatpush1.msra.mxu0 0.0
    %2306 = vmatprep.subr.mxu0 0.0
    %2307 = vmatpush1.msra.mxu0 0.0
    %2308 = vmatprep.subr.mxu0 0.0
    %2309 = vmatpush1.msra.mxu0 0.0
    %2310 = vmatprep.subr.mxu0 0.0
    %2311 = vmatpush1.msra.mxu0 0.0
    %2312 = vmatprep.subr.mxu0 0.0
    %2313 = vmatpush1.msra.mxu0 0.0
    %2314 = vmatprep.subr.mxu0 0.0
    %2315 = vmatpush1.msra.mxu0 0.0
    %2316 = vmatprep.subr.mxu0 0.0
    %2317 = vmatpush1.msra.mxu0 0.0
    %2318 = vmatprep.subr.mxu0 0.0
    %2319 = vmatpush1.msra.mxu0 0.0
    %2320 = vmatprep.subr.mxu0 0.0
    %2321 = vmatpush1.msra.mxu0 0.0
    %2322 = vmatprep.subr.mxu0 0.0
    %2323 = vmatpush1.msra.mxu0 0.0
    %2324 = vmatprep.subr.mxu0 0.0
    %2325 = vmatpush1.msra.mxu0 0.0
    %2326 = vmatprep.subr.mxu0 0.0
    %2327 = vmatpush1.msra.mxu0 0.0
    %2328 = vmatprep.mubr.f32.mxu0 0.0
    %2329 = vmatmul.mubr.f32.gmra.mrb[0].mxu0 %v2262
    %v2330 = vpop.f32.mrb[0].mxu0
    %v2331 = vadd.f32 0.0, %v2330
    %v2332 = vpop.f32.mrb[0].mxu0
    %2333 = vdwg.mxu0
    %v2334 = vadd.f32 %v2258, %v2331
    %s2335 = scalar_lea.vmem %s7, 16
    %v2336 = vld [vmem:[%s2335] sm:$0xff]
    %v2338 = vsel %vm2178, %v2336, 0
    %2340 = vmatprep.subr.mxu0 0.0
    %2341 = vmatpush1.msra.mxu0 %v2168
    %2342 = vmatprep.subr.mxu0 0.0
    %2343 = vmatpush1.msra.mxu0 %v2172
    %2344 = vmatprep.subr.mxu0 0.0
    %2345 = vmatpush1.msra.mxu0 0.0
    %2346 = vmatprep.subr.mxu0 0.0
    %2347 = vmatpush1.msra.mxu0 0.0
    %2348 = vmatprep.subr.mxu0 0.0
    %2349 = vmatpush1.msra.mxu0 0.0
    %2350 = vmatprep.subr.mxu0 0.0
    %2351 = vmatpush1.msra.mxu0 0.0
    %2352 = vmatprep.subr.mxu0 0.0
    %2353 = vmatpush1.msra.mxu0 0.0
    %2354 = vmatprep.subr.mxu0 0.0
    %2355 = vmatpush1.msra.mxu0 0.0
    %2356 = vmatprep.subr.mxu0 0.0
    %2357 = vmatpush1.msra.mxu0 0.0
    %2358 = vmatprep.subr.mxu0 0.0
    %2359 = vmatpush1.msra.mxu0 0.0
    %2360 = vmatprep.subr.mxu0 0.0
    %2361 = vmatpush1.msra.mxu0 0.0
    %2362 = vmatprep.subr.mxu0 0.0
    %2363 = vmatpush1.msra.mxu0 0.0
    %2364 = vmatprep.subr.mxu0 0.0
    %2365 = vmatpush1.msra.mxu0 0.0
    %2366 = vmatprep.subr.mxu0 0.0
    %2367 = vmatpush1.msra.mxu0 0.0
    %2368 = vmatprep.subr.mxu0 0.0
    %2369 = vmatpush1.msra.mxu0 0.0
    %2370 = vmatprep.subr.mxu0 0.0
    %2371 = vmatpush1.msra.mxu0 0.0
    %2372 = vmatprep.subr.mxu0 0.0
    %2373 = vmatpush1.msra.mxu0 0.0
    %2374 = vmatprep.subr.mxu0 0.0
    %2375 = vmatpush1.msra.mxu0 0.0
    %2376 = vmatprep.subr.mxu0 0.0
    %2377 = vmatpush1.msra.mxu0 0.0
    %2378 = vmatprep.subr.mxu0 0.0
    %2379 = vmatpush1.msra.mxu0 0.0
    %2380 = vmatprep.subr.mxu0 0.0
    %2381 = vmatpush1.msra.mxu0 0.0
    %2382 = vmatprep.subr.mxu0 0.0
    %2383 = vmatpush1.msra.mxu0 0.0
    %2384 = vmatprep.subr.mxu0 0.0
    %2385 = vmatpush1.msra.mxu0 0.0
    %2386 = vmatprep.subr.mxu0 0.0
    %2387 = vmatpush1.msra.mxu0 0.0
    %2388 = vmatprep.subr.mxu0 0.0
    %2389 = vmatpush1.msra.mxu0 0.0
    %2390 = vmatprep.subr.mxu0 0.0
    %2391 = vmatpush1.msra.mxu0 0.0
    %2392 = vmatprep.subr.mxu0 0.0
    %2393 = vmatpush1.msra.mxu0 0.0
    %2394 = vmatprep.subr.mxu0 0.0
    %2395 = vmatpush1.msra.mxu0 0.0
    %2396 = vmatprep.subr.mxu0 0.0
    %2397 = vmatpush1.msra.mxu0 0.0
    %2398 = vmatprep.subr.mxu0 0.0
    %2399 = vmatpush1.msra.mxu0 0.0
    %2400 = vmatprep.subr.mxu0 0.0
    %2401 = vmatpush1.msra.mxu0 0.0
    %2402 = vmatprep.subr.mxu0 0.0
    %2403 = vmatpush1.msra.mxu0 0.0
    %2404 = vmatprep.mubr.f32.mxu0 0.0
    %2405 = vmatmul.mubr.f32.gmra.mrb[0].mxu0 %v2338
    %v2406 = vpop.f32.mrb[0].mxu0
    %v2407 = vadd.f32 0.0, %v2406
    %v2408 = vpop.f32.mrb[0].mxu0
    %2409 = vdwg.mxu0
    %v2410 = vadd.f32 %v2334, %v2407
    %s2411 = scalar_lea.vmem %s7, 24
    %v2412 = vld [vmem:[%s2411] sm:$0xff]
    %v2414 = vsel %vm2178, %v2412, 0
    %2416 = vmatprep.subr.mxu0 0.0
    %2417 = vmatpush1.msra.mxu0 %v2170
    %2418 = vmatprep.subr.mxu0 0.0
    %2419 = vmatpush1.msra.mxu0 %v2174
    %2420 = vmatprep.subr.mxu0 0.0
    %2421 = vmatpush1.msra.mxu0 0.0
    %2422 = vmatprep.subr.mxu0 0.0
    %2423 = vmatpush1.msra.mxu0 0.0
    %2424 = vmatprep.subr.mxu0 0.0
    %2425 = vmatpush1.msra.mxu0 0.0
    %2426 = vmatprep.subr.mxu0 0.0
    %2427 = vmatpush1.msra.mxu0 0.0
    %2428 = vmatprep.subr.mxu0 0.0
    %2429 = vmatpush1.msra.mxu0 0.0
    %2430 = vmatprep.subr.mxu0 0.0
    %2431 = vmatpush1.msra.mxu0 0.0
    %2432 = vmatprep.subr.mxu0 0.0
    %2433 = vmatpush1.msra.mxu0 0.0
    %2434 = vmatprep.subr.mxu0 0.0
    %2435 = vmatpush1.msra.mxu0 0.0
    %2436 = vmatprep.subr.mxu0 0.0
    %2437 = vmatpush1.msra.mxu0 0.0
    %2438 = vmatprep.subr.mxu0 0.0
    %2439 = vmatpush1.msra.mxu0 0.0
    %2440 = vmatprep.subr.mxu0 0.0
    %2441 = vmatpush1.msra.mxu0 0.0
    %2442 = vmatprep.subr.mxu0 0.0
    %2443 = vmatpush1.msra.mxu0 0.0
    %2444 = vmatprep.subr.mxu0 0.0
    %2445 = vmatpush1.msra.mxu0 0.0
    %2446 = vmatprep.subr.mxu0 0.0
    %2447 = vmatpush1.msra.mxu0 0.0
    %2448 = vmatprep.subr.mxu0 0.0
    %2449 = vmatpush1.msra.mxu0 0.0
    %2450 = vmatprep.subr.mxu0 0.0
    %2451 = vmatpush1.msra.mxu0 0.0
    %2452 = vmatprep.subr.mxu0 0.0
    %2453 = vmatpush1.msra.mxu0 0.0
    %2454 = vmatprep.subr.mxu0 0.0
    %2455 = vmatpush1.msra.mxu0 0.0
    %2456 = vmatprep.subr.mxu0 0.0
    %2457 = vmatpush1.msra.mxu0 0.0
    %2458 = vmatprep.subr.mxu0 0.0
    %2459 = vmatpush1.msra.mxu0 0.0
    %2460 = vmatprep.subr.mxu0 0.0
    %2461 = vmatpush1.msra.mxu0 0.0
    %2462 = vmatprep.subr.mxu0 0.0
    %2463 = vmatpush1.msra.mxu0 0.0
    %2464 = vmatprep.subr.mxu0 0.0
    %2465 = vmatpush1.msra.mxu0 0.0
    %2466 = vmatprep.subr.mxu0 0.0
    %2467 = vmatpush1.msra.mxu0 0.0
    %2468 = vmatprep.subr.mxu0 0.0
    %2469 = vmatpush1.msra.mxu0 0.0
    %2470 = vmatprep.subr.mxu0 0.0
    %2471 = vmatpush1.msra.mxu0 0.0
    %2472 = vmatprep.subr.mxu0 0.0
    %2473 = vmatpush1.msra.mxu0 0.0
    %2474 = vmatprep.subr.mxu0 0.0
    %2475 = vmatpush1.msra.mxu0 0.0
    %2476 = vmatprep.subr.mxu0 0.0
    %2477 = vmatpush1.msra.mxu0 0.0
    %2478 = vmatprep.subr.mxu0 0.0
    %2479 = vmatpush1.msra.mxu0 0.0
    %2480 = vmatprep.mubr.f32.mxu0 0.0
    %2481 = vmatmul.mubr.f32.gmra.mrb[0].mxu0 %v2414
    %v2482 = vpop.f32.mrb[0].mxu0
    %v2483 = vadd.f32 0.0, %v2482
    %v2484 = vpop.f32.mrb[0].mxu0
    %2485 = vdwg.mxu0
    %v2486 = vadd.f32 %v2410, %v2483
    %v2487 = vmax.f32 %v2486, 0.0
    %v2488 = vpack.c.bf16 %v2487, %v2487
    %v2489 = vld [vmem:[%s11] sm:$0xf]
    %v2490 = vld [vmem:[%s11 + $0x4] sm:$0xf]
    %v2491 = vld [vmem:[%s11 + $0x8] sm:$0xf]
    %v2492 = vld [vmem:[%s11 + $0xc] sm:$0xf]
    %v2493 = vld [vmem:[%s11 + $0x10] sm:$0xf]
    %v2494 = vld [vmem:[%s11 + $0x14] sm:$0xf]
    %v2495 = vld [vmem:[%s11 + $0x18] sm:$0xf]
    %v2496 = vld [vmem:[%s11 + $0x1c] sm:$0xf]
    %v2497 = vld [vmem:[%s11 + $0x20] sm:$0xf]
    %v2498 = vld [vmem:[%s11 + $0x24] sm:$0xf]
    %v2499 = vld [vmem:[%s11 + $0x28] sm:$0xf]
    %v2500 = vld [vmem:[%s11 + $0x2c] sm:$0xf]
    %v2501 = vld [vmem:[%s11 + $0x30] sm:$0xf]
    %v2502 = vld [vmem:[%s11 + $0x34] sm:$0xf]
    %v2503 = vld [vmem:[%s11 + $0x38] sm:$0xf]
    %v2504 = vld [vmem:[%s11 + $0x3c] sm:$0xf]
    %v2521 = vunpack.c.l.b16 %v2489
    %v2522 = vunpack.c.l.b16 %v2490
    %v2523 = vunpack.c.l.b16 %v2491
    %v2524 = vunpack.c.l.b16 %v2492
    %v2525 = vunpack.c.l.b16 %v2493
    %v2526 = vunpack.c.l.b16 %v2494
    %v2527 = vunpack.c.l.b16 %v2495
    %v2528 = vunpack.c.l.b16 %v2496
    %v2529 = vunpack.c.l.b16 %v2497
    %v2530 = vunpack.c.l.b16 %v2498
    %v2531 = vunpack.c.l.b16 %v2499
    %v2532 = vunpack.c.l.b16 %v2500
    %v2533 = vunpack.c.l.b16 %v2501
    %v2534 = vunpack.c.l.b16 %v2502
    %v2535 = vunpack.c.l.b16 %v2503
    %v2536 = vunpack.c.l.b16 %v2504
    %v2537 = vpack.c.b16 %v2522, %v2521
    %v2538 = vpack.c.b16 %v2524, %v2523
    %v2539 = vpack.c.b16 %v2526, %v2525
    %v2540 = vpack.c.b16 %v2528, %v2527
    %v2541 = vpack.c.b16 %v2530, %v2529
    %v2542 = vpack.c.b16 %v2532, %v2531
    %v2543 = vpack.c.b16 %v2534, %v2533
    %v2544 = vpack.c.b16 %v2536, %v2535
    %2553 = vmatprep.subr.bf16.mxu0 0
    %2554 = vmatpush1.bf16.msra.mxu0 %v2537
    %2555 = vmatprep.subr.bf16.mxu0 0
    %2556 = vmatpush1.bf16.msra.mxu0 %v2538
    %2557 = vmatprep.subr.bf16.mxu0 0
    %2558 = vmatpush1.bf16.msra.mxu0 %v2539
    %2559 = vmatprep.subr.bf16.mxu0 0
    %2560 = vmatpush1.bf16.msra.mxu0 %v2540
    %2561 = vmatprep.subr.bf16.mxu0 0
    %2562 = vmatpush1.bf16.msra.mxu0 %v2541
    %2563 = vmatprep.subr.bf16.mxu0 0
    %2564 = vmatpush1.bf16.msra.mxu0 %v2542
    %2565 = vmatprep.subr.bf16.mxu0 0
    %2566 = vmatpush1.bf16.msra.mxu0 %v2543
    %2567 = vmatprep.subr.bf16.mxu0 0
    %2568 = vmatpush1.bf16.msra.mxu0 %v2544
    %2569 = vmatprep.subr.bf16.mxu0 0
    %2570 = vmatpush1.bf16.msra.mxu0 0
    %2571 = vmatprep.subr.bf16.mxu0 0
    %2572 = vmatpush1.bf16.msra.mxu0 0
    %2573 = vmatprep.subr.bf16.mxu0 0
    %2574 = vmatpush1.bf16.msra.mxu0 0
    %2575 = vmatprep.subr.bf16.mxu0 0
    %2576 = vmatpush1.bf16.msra.mxu0 0
    %2577 = vmatprep.subr.bf16.mxu0 0
    %2578 = vmatpush1.bf16.msra.mxu0 0
    %2579 = vmatprep.subr.bf16.mxu0 0
    %2580 = vmatpush1.bf16.msra.mxu0 0
    %2581 = vmatprep.subr.bf16.mxu0 0
    %2582 = vmatpush1.bf16.msra.mxu0 0
    %2583 = vmatprep.subr.bf16.mxu0 0
    %2584 = vmatpush1.bf16.msra.mxu0 0
    %2585 = vmatprep.mubr.bf16.mxu0 0
    %2586 = vmatmul.mubr.bf16.gmra.mrb[0].mxu0 %v2488
    %v2587 = vpop.f32.mrb[0].mxu0
    %v2588 = vadd.f32 0.0, %v2587
    %v2589 = vpop.f32.mrb[0].mxu0
    %v2590 = vpop.f32.mrb[0].mxu0
    %v2591 = vpop.f32.mrb[0].mxu0
    %2592 = vdwg.mxu0
    %v2593 = vld [vmem:[%s10] sm:$0x3]
    %v2594 = vld [vmem:[%s12] sm:$0x1]
    %v2596 = vlaneseq
    %v2597 = vshrl.u32 %v2596, 7
    %v2598 = vsub.s32 0, %v2597
    %v2599 = vrot.slane %v2594, %v2598
    %vm2601 = vcmask 64512
    %v2603 = vsel %vm2601, %v2593, 0
    %2605 = vmatprep.subr.mxu0 0.0
    %2606 = vmatpush1.msra.mxu0 %v2588
    %2607 = vmatprep.subr.mxu0 0.0
    %2608 = vmatpush1.msra.mxu0 0.0
    %2609 = vmatprep.subr.mxu0 0.0
    %2610 = vmatpush1.msra.mxu0 0.0
    %2611 = vmatprep.subr.mxu0 0.0
    %2612 = vmatpush1.msra.mxu0 0.0
    %2613 = vmatprep.subr.mxu0 0.0
    %2614 = vmatpush1.msra.mxu0 0.0
    %2615 = vmatprep.subr.mxu0 0.0
    %2616 = vmatpush1.msra.mxu0 0.0
    %2617 = vmatprep.subr.mxu0 0.0
    %2618 = vmatpush1.msra.mxu0 0.0
    %2619 = vmatprep.subr.mxu0 0.0
    %2620 = vmatpush1.msra.mxu0 0.0
    %2621 = vmatprep.subr.mxu0 0.0
    %2622 = vmatpush1.msra.mxu0 0.0
    %2623 = vmatprep.subr.mxu0 0.0
    %2624 = vmatpush1.msra.mxu0 0.0
    %2625 = vmatprep.subr.mxu0 0.0
    %2626 = vmatpush1.msra.mxu0 0.0
    %2627 = vmatprep.subr.mxu0 0.0
    %2628 = vmatpush1.msra.mxu0 0.0
    %2629 = vmatprep.subr.mxu0 0.0
    %2630 = vmatpush1.msra.mxu0 0.0
    %2631 = vmatprep.subr.mxu0 0.0
    %2632 = vmatpush1.msra.mxu0 0.0
    %2633 = vmatprep.subr.mxu0 0.0
    %2634 = vmatpush1.msra.mxu0 0.0
    %2635 = vmatprep.subr.mxu0 0.0
    %2636 = vmatpush1.msra.mxu0 0.0
    %2637 = vmatprep.subr.mxu0 0.0
    %2638 = vmatpush1.msra.mxu0 0.0
    %2639 = vmatprep.subr.mxu0 0.0
    %2640 = vmatpush1.msra.mxu0 0.0
    %2641 = vmatprep.subr.mxu0 0.0
    %2642 = vmatpush1.msra.mxu0 0.0
    %2643 = vmatprep.subr.mxu0 0.0
    %2644 = vmatpush1.msra.mxu0 0.0
    %2645 = vmatprep.subr.mxu0 0.0
    %2646 = vmatpush1.msra.mxu0 0.0
    %2647 = vmatprep.subr.mxu0 0.0
    %2648 = vmatpush1.msra.mxu0 0.0
    %2649 = vmatprep.subr.mxu0 0.0
    %2650 = vmatpush1.msra.mxu0 0.0
    %2651 = vmatprep.subr.mxu0 0.0
    %2652 = vmatpush1.msra.mxu0 0.0
    %2653 = vmatprep.subr.mxu0 0.0
    %2654 = vmatpush1.msra.mxu0 0.0
    %2655 = vmatprep.subr.mxu0 0.0
    %2656 = vmatpush1.msra.mxu0 0.0
    %2657 = vmatprep.subr.mxu0 0.0
    %2658 = vmatpush1.msra.mxu0 0.0
    %2659 = vmatprep.subr.mxu0 0.0
    %2660 = vmatpush1.msra.mxu0 0.0
    %2661 = vmatprep.subr.mxu0 0.0
    %2662 = vmatpush1.msra.mxu0 0.0
    %2663 = vmatprep.subr.mxu0 0.0
    %2664 = vmatpush1.msra.mxu0 0.0
    %2665 = vmatprep.subr.mxu0 0.0
    %2666 = vmatpush1.msra.mxu0 0.0
    %2667 = vmatprep.subr.mxu0 0.0
    %2668 = vmatpush1.msra.mxu0 0.0
    %2669 = vmatprep.mubr.f32.mxu0 0.0
    %2670 = vmatmul.mubr.f32.gmra.mrb[0].mxu0 %v2603
    %v2671 = vpop.f32.mrb[0].mxu0
    %v2672 = vadd.f32 %v2599, %v2671
    %v2673 = vpop.f32.mrb[0].mxu0
    %2674 = vdwg.mxu0
    %vm2675 = vcmask 58368
    %2676 = vst.msk [vmem:[#allocation8] sm:$0x3] %vm2675, %v2672
    // Predicated region
    $region66: #{style_encoder_forward.1} parent=1 // pred_check
      _
    $region67: #{style_encoder_forward.1} parent=1 // pred_check_branch
      %2678 = sbr.rel (0) target = $region69
    $region68: #{style_encoder_forward.1} parent=1 // pred_region
      %s2680 = ssub.s32 32, 32
      %2681 = vsyncadd [#allocation4], %s2680
      %s2683 = sshll.u32 [#allocation8], 4
      %s2684 = int_to_ptr.vmem [resolvable:$true] %s2683
      %2686 = dma.vmem_to_hbm [thread:$0]  %s2684, 32, %s13, [#allocation4]
    $region69: #{style_encoder_forward.1} parent=1 // pred_fallthru
      _
    // Predicated region
    $region70: #{style_encoder_forward.1} parent=1 // pred_check
      _
    $region71: #{style_encoder_forward.1} parent=1 // pred_check_branch
      %2688 = sbr.rel (0) target = $region73
    $region72: #{style_encoder_forward.1} parent=1 // pred_region
      %2689 = dma.done [#allocation4], 32
    $region73: #{style_encoder_forward.1} parent=1 // pred_fallthru
      _
    %2690 = vsyncpa [#allocation3], 1
    %2691 = vsyncpa [#allocation6], 1
    %2692 = vsyncpa [#allocation4], 1

</llo_original>
